<compile_context>
chip_gen: v7x
topology: tpu7x:2x2x1
jax: 0.10.0
libtpu: 0.0.40
codegen_flags: <defaults>
</compile_context>

<pallas_src>
import math
import jax
import jax.numpy as jnp
from jax import lax
from jax.experimental import pallas as pl
from jax.experimental.pallas import tpu as pltpu

# ----- model config (small synthetic shapes) -----
B = 2          # batch
S = 8          # sequence length
H = 32         # hidden
NH = 4         # attention heads
DH = H // NH   # head dim
FF = 64        # feed-forward hidden
EPS = 1e-6

_SQRT_2_OVER_PI = math.sqrt(2.0 / math.pi)
_NEG_INF = jnp.float32(-1e9)


def _gelu(x):
    # BERT tanh-approximation GELU (matches the PyTorch GELU module).
    return 0.5 * x * (1.0 + jnp.tanh(_SQRT_2_OVER_PI * (x + 0.044715 * x * x * x)))


def _layer_norm(v, g, b):
    # PyTorch: std(-1) is unbiased (divides by N-1); eps is added to std, not var.
    n = v.shape[-1]
    mean = jnp.mean(v, axis=-1, keepdims=True)
    diff = v - mean
    var = jnp.sum(diff * diff, axis=-1, keepdims=True) * (1.0 / (n - 1))
    inv = pl.reciprocal(jnp.sqrt(var) + EPS, approx=True)   # EUP, ~free
    return g * (diff * inv) + b


def transformer_block_kernel(
    x_ref, bias_ref,
    ln1_g_ref, ln1_b_ref,
    wq_ref, bq_ref, wk_ref, bk_ref, wv_ref, bv_ref, wo_ref, bo_ref,
    ln2_g_ref, ln2_b_ref,
    w1_ref, b1_ref, w2_ref, b2_ref,
    out_ref,
):
    x = x_ref[0]          # (R, H) f32, R = batch_block * S (batch folded into rows)
    bias = bias_ref[0]    # (R, R) f32 additive mask (0 attend / -1e9 masked or cross-batch)

    # ---- input sublayer: x + Attention(LayerNorm(x)) ----
    h = _layer_norm(x, ln1_g_ref[...], ln1_b_ref[...])
    hb = h.astype(jnp.bfloat16)                          # bf16 operands for the MXU

    scale = 1.0 / math.sqrt(DH)
    q = (jnp.dot(hb, wq_ref[...], preferred_element_type=jnp.float32) + bq_ref[...]) * scale
    k = jnp.dot(hb, wk_ref[...], preferred_element_type=jnp.float32) + bk_ref[...]
    v = jnp.dot(hb, wv_ref[...], preferred_element_type=jnp.float32) + bv_ref[...]
    qb = q.astype(jnp.bfloat16)
    kb = k.astype(jnp.bfloat16)
    vb = v.astype(jnp.bfloat16)

    # Output projection fused into the head loop: no concatenate of head outputs.
    attn = bo_ref[...].astype(jnp.float32)               # (1, H), broadcasts on first add
    dn = (((1,), (1,)), ((), ()))                        # contract last dims: q @ k^T
    for hd in range(NH):                                 # static unroll over heads
        lo = hd * DH
        qs = qb[:, lo:lo + DH]                           # (R, DH)
        ks = kb[:, lo:lo + DH]                           # (R, DH)
        vs = vb[:, lo:lo + DH]                           # (R, DH)
        scores = lax.dot_general(qs, ks, dn, preferred_element_type=jnp.float32)  # (R, R)
        scores = scores + bias
        scores = scores - jnp.max(scores, axis=-1, keepdims=True)
        p = jnp.exp(scores)
        p = p * pl.reciprocal(jnp.sum(p, axis=-1, keepdims=True), approx=True)
        ctx = jnp.dot(p.astype(jnp.bfloat16), vs, preferred_element_type=jnp.float32)  # (R, DH)
        attn = attn + jnp.dot(ctx.astype(jnp.bfloat16), wo_ref[lo:lo + DH, :],
                              preferred_element_type=jnp.float32)

    # TODO(synk): dropout layers are identity here (eval-mode forward).
    x1 = x + attn

    # ---- output sublayer: x1 + FFN(LayerNorm(x1)) ----
    h2 = _layer_norm(x1, ln2_g_ref[...], ln2_b_ref[...])
    ff = jnp.dot(h2.astype(jnp.bfloat16), w1_ref[...],
                 preferred_element_type=jnp.float32) + b1_ref[...]
    ff = _gelu(ff)
    ff = jnp.dot(ff.astype(jnp.bfloat16), w2_ref[...],
                 preferred_element_type=jnp.float32) + b2_ref[...]

    out_ref[0] = (x1 + ff).astype(out_ref.dtype)


def transformer_block(x, mask, params, *, batch_block=None):
    """x: (B, S, H) f32, mask: (B, S, S) f32 (1=attend, 0=mask).

    batch_block: batches processed per grid step. Default = B (single grid step,
    best on single-TC v5e/v6e). On v7x pass batch_block=B//2 so the 'parallel'
    grid axis feeds both TensorCores.
    """
    Bn, Sn, Hn = x.shape
    BB = Bn if batch_block is None else batch_block
    assert Bn % BB == 0
    G = Bn // BB            # grid steps
    R = BB * Sn             # rows per step

    # Additive attention bias, block-diagonal across the BB batches in a step:
    # 0 where attendable, -1e9 where masked or cross-batch. Hoisted out of the kernel.
    mbias = jnp.where(mask > 0, jnp.float32(0.0), _NEG_INF).reshape(G, BB, Sn, Sn)
    eye = jnp.eye(BB, dtype=jnp.float32)
    bias = jnp.where(eye[None, :, None, :, None] > 0, mbias[:, :, :, None, :], _NEG_INF)
    bias = bias.reshape(G, R, R)

    x3 = x.reshape(G, R, Hn)

    # bf16 weight matrices for the MXU (halves weight DMA); biases / LN params stay f32.
    bf = jnp.bfloat16
    param_arrays = [
        params["ln1_g"], params["ln1_b"],
        params["wq"].astype(bf), params["bq"],
        params["wk"].astype(bf), params["bk"],
        params["wv"].astype(bf), params["bv"],
        params["wo"].astype(bf), params["bo"],
        params["ln2_g"], params["ln2_b"],
        params["w1"].astype(bf), params["b1"],
        params["w2"].astype(bf), params["b2"],
    ]

    x_spec = pl.BlockSpec((1, R, Hn), lambda g: (g, 0, 0))
    bias_spec = pl.BlockSpec((1, R, R), lambda g: (g, 0, 0))

    def full_spec(a):
        return pl.BlockSpec(a.shape, lambda g, _nd=a.ndim: (0,) * _nd)

    param_specs = [full_spec(a) for a in param_arrays]

    out = pl.pallas_call(
        transformer_block_kernel,
        out_shape=jax.ShapeDtypeStruct((G, R, Hn), x.dtype),
        grid_spec=pltpu.PrefetchScalarGridSpec(
            num_scalar_prefetch=0,
            grid=(G,),
            in_specs=[x_spec, bias_spec] + param_specs,
            out_specs=pl.BlockSpec((1, R, Hn), lambda g: (g, 0, 0)),
        ),
        compiler_params=pltpu.CompilerParams(
            dimension_semantics=("parallel",),
        ),
    )(x3, bias, *param_arrays)

    return out.reshape(Bn, Sn, Hn)


def init_params(key):
    """Deterministic synthetic parameters. Linear weights are (in, out)."""
    ks = jax.random.split(key, 8)
    scale = 0.02
    return {
        "ln1_g": jnp.ones((1, H), jnp.float32),
        "ln1_b": jnp.zeros((1, H), jnp.float32),
        "ln2_g": jnp.ones((1, H), jnp.float32),
        "ln2_b": jnp.zeros((1, H), jnp.float32),
        "wq": scale * jax.random.normal(ks[0], (H, H), jnp.float32),
        "bq": jnp.zeros((1, H), jnp.float32),
        "wk": scale * jax.random.normal(ks[1], (H, H), jnp.float32),
        "bk": jnp.zeros((1, H), jnp.float32),
        "wv": scale * jax.random.normal(ks[2], (H, H), jnp.float32),
        "bv": jnp.zeros((1, H), jnp.float32),
        "wo": scale * jax.random.normal(ks[3], (H, H), jnp.float32),
        "bo": jnp.zeros((1, H), jnp.float32),
        "w1": scale * jax.random.normal(ks[4], (H, FF), jnp.float32),
        "b1": jnp.zeros((1, FF), jnp.float32),
        "w2": scale * jax.random.normal(ks[5], (FF, H), jnp.float32),
        "b2": jnp.zeros((1, H), jnp.float32),
    }


def reference_forward(x, mask, p):
    """Pure-JAX f32 reference (same math as the PyTorch module, dropout = identity)."""
    def ln(v, g, b):
        n = v.shape[-1]
        mean = jnp.mean(v, -1, keepdims=True)
        var = jnp.sum((v - mean) ** 2, -1, keepdims=True) / (n - 1)
        return g[0] * (v - mean) / (jnp.sqrt(var) + EPS) + b[0]

    h = ln(x, p["ln1_g"], p["ln1_b"])
    q = h @ p["wq"] + p["bq"][0]
    k = h @ p["wk"] + p["bk"][0]
    v = h @ p["wv"] + p["bv"][0]
    qh = q.reshape(B, S, NH, DH).transpose(0, 2, 1, 3)
    kh = k.reshape(B, S, NH, DH).transpose(0, 2, 1, 3)
    vh = v.reshape(B, S, NH, DH).transpose(0, 2, 1, 3)
    scores = jnp.einsum("bhqd,bhkd->bhqk", qh, kh) / math.sqrt(DH)
    scores = jnp.where(mask[:, None, :, :] > 0, scores, -1e9)
    attn = jax.nn.softmax(scores, -1)
    ctx = jnp.einsum("bhqk,bhkd->bhqd", attn, vh).transpose(0, 2, 1, 3).reshape(B, S, H)
    x1 = x + (ctx @ p["wo"] + p["bo"][0])
    h2 = ln(x1, p["ln2_g"], p["ln2_b"])
    ff = _gelu(h2 @ p["w1"] + p["b1"][0]) @ p["w2"] + p["b2"][0]
    return x1 + ff


if __name__ == "__main__":
    key = jax.random.PRNGKey(0)
    kx, km, kp = jax.random.split(key, 3)

    x = jax.random.normal(kx, (B, S, H), jnp.float32)
    # random mask: 1 = attend, 0 = masked; keep diagonal attendable
    mask = (jax.random.uniform(km, (B, S, S)) > 0.2).astype(jnp.float32)
    mask = jnp.maximum(mask, jnp.eye(S, dtype=jnp.float32)[None])

    params = init_params(kp)

    out = transformer_block(x, mask, params)
    out = jax.block_until_ready(out)

    ref = reference_forward(x, mask, params)
    assert out.shape == (B, S, H)
    # bf16 MXU operands + approx reciprocals -> tolerance relaxed vs pure-f32 reference.
    err = float(jnp.max(jnp.abs(out - ref)))
    assert jnp.allclose(out, ref, atol=5e-3, rtol=5e-3), err

    print("KERNEL_OK")
</pallas_src>

<mosaic_0001>
module attributes {stable_mosaic.version = 11 : i64} {
  func.func @transformer_block_kernel(%arg0: i32, %arg1: memref<1x16x32xf32, #tpu.memory_space<vmem>>, %arg2: memref<1x16x16xf32, #tpu.memory_space<vmem>>, %arg3: memref<1x32xf32, #tpu.memory_space<vmem>>, %arg4: memref<1x32xf32, #tpu.memory_space<vmem>>, %arg5: memref<32x32xbf16, #tpu.memory_space<vmem>>, %arg6: memref<1x32xf32, #tpu.memory_space<vmem>>, %arg7: memref<32x32xbf16, #tpu.memory_space<vmem>>, %arg8: memref<1x32xf32, #tpu.memory_space<vmem>>, %arg9: memref<32x32xbf16, #tpu.memory_space<vmem>>, %arg10: memref<1x32xf32, #tpu.memory_space<vmem>>, %arg11: memref<32x32xbf16, #tpu.memory_space<vmem>>, %arg12: memref<1x32xf32, #tpu.memory_space<vmem>>, %arg13: memref<1x32xf32, #tpu.memory_space<vmem>>, %arg14: memref<1x32xf32, #tpu.memory_space<vmem>>, %arg15: memref<32x64xbf16, #tpu.memory_space<vmem>>, %arg16: memref<1x64xf32, #tpu.memory_space<vmem>>, %arg17: memref<64x32xbf16, #tpu.memory_space<vmem>>, %arg18: memref<1x32xf32, #tpu.memory_space<vmem>>, %arg19: memref<1x16x32xf32, #tpu.memory_space<vmem>>) attributes {dimension_semantics = [#tpu.dimension_semantics<parallel>], iteration_bounds = array<i64: 1>, scalar_prefetch = 0 : i64, scratch_operands = 0 : i64, tpu.core_type = #tpu.core_type<tc>, window_params = [{transform_indices = @transform_0, window_bounds = array<i64: 1, 16, 32>}, {transform_indices = @transform_1, window_bounds = array<i64: 1, 16, 16>}, {pipeline_mode = #tpu.pipeline_mode<synchronous>, transform_indices = @transform_2, window_bounds = array<i64: 1, 32>}, {pipeline_mode = #tpu.pipeline_mode<synchronous>, transform_indices = @transform_3, window_bounds = array<i64: 1, 32>}, {pipeline_mode = #tpu.pipeline_mode<synchronous>, transform_indices = @transform_4, window_bounds = array<i64: 32, 32>}, {pipeline_mode = #tpu.pipeline_mode<synchronous>, transform_indices = @transform_5, window_bounds = array<i64: 1, 32>}, {pipeline_mode = #tpu.pipeline_mode<synchronous>, transform_indices = @transform_6, window_bounds = array<i64: 32, 32>}, {pipeline_mode = #tpu.pipeline_mode<synchronous>, transform_indices = @transform_7, window_bounds = array<i64: 1, 32>}, {pipeline_mode = #tpu.pipeline_mode<synchronous>, transform_indices = @transform_8, window_bounds = array<i64: 32, 32>}, {pipeline_mode = #tpu.pipeline_mode<synchronous>, transform_indices = @transform_9, window_bounds = array<i64: 1, 32>}, {pipeline_mode = #tpu.pipeline_mode<synchronous>, transform_indices = @transform_10, window_bounds = array<i64: 32, 32>}, {pipeline_mode = #tpu.pipeline_mode<synchronous>, transform_indices = @transform_11, window_bounds = array<i64: 1, 32>}, {pipeline_mode = #tpu.pipeline_mode<synchronous>, transform_indices = @transform_12, window_bounds = array<i64: 1, 32>}, {pipeline_mode = #tpu.pipeline_mode<synchronous>, transform_indices = @transform_13, window_bounds = array<i64: 1, 32>}, {pipeline_mode = #tpu.pipeline_mode<synchronous>, transform_indices = @transform_14, window_bounds = array<i64: 32, 64>}, {pipeline_mode = #tpu.pipeline_mode<synchronous>, transform_indices = @transform_15, window_bounds = array<i64: 1, 64>}, {pipeline_mode = #tpu.pipeline_mode<synchronous>, transform_indices = @transform_16, window_bounds = array<i64: 64, 32>}, {pipeline_mode = #tpu.pipeline_mode<synchronous>, transform_indices = @transform_17, window_bounds = array<i64: 1, 32>}, {transform_indices = @transform_18, window_bounds = array<i64: 1, 16, 32>}]} {
    %c0 = arith.constant 0 : index
    %c0_0 = arith.constant 0 : index
    %c0_1 = arith.constant 0 : index
    %0 = vector.load %arg1[%c0, %c0_0, %c0_1] : memref<1x16x32xf32, #tpu.memory_space<vmem>>, vector<1x16x32xf32>
    %1 = vector.shape_cast %0 : vector<1x16x32xf32> to vector<16x32xf32>
    %c0_2 = arith.constant 0 : index
    %c0_3 = arith.constant 0 : index
    %c0_4 = arith.constant 0 : index
    %2 = vector.load %arg2[%c0_2, %c0_3, %c0_4] : memref<1x16x16xf32, #tpu.memory_space<vmem>>, vector<1x16x16xf32>
    %3 = vector.shape_cast %2 : vector<1x16x16xf32> to vector<16x16xf32>
    %c0_5 = arith.constant 0 : index
    %c0_6 = arith.constant 0 : index
    %4 = vector.load %arg3[%c0_5, %c0_6] : memref<1x32xf32, #tpu.memory_space<vmem>>, vector<1x32xf32>
    %c0_7 = arith.constant 0 : index
    %c0_8 = arith.constant 0 : index
    %5 = vector.load %arg4[%c0_7, %c0_8] : memref<1x32xf32, #tpu.memory_space<vmem>>, vector<1x32xf32>
    %cst = arith.constant dense<0.000000e+00> : vector<16xf32>
    %6 = vector.multi_reduction <add>, %1, %cst [1] : vector<16x32xf32> to vector<16xf32>
    %7 = vector.shape_cast %6 : vector<16xf32> to vector<16x1xf32>
    %cst_9 = arith.constant 3.200000e+01 : f32
    %8 = vector.broadcast %cst_9 : f32 to vector<16x1xf32>
    %9 = arith.divf %7, %8 : vector<16x1xf32>
    %10 = vector.broadcast %9 : vector<16x1xf32> to vector<16x32xf32>
    %11 = arith.subf %1, %10 : vector<16x32xf32>
    %12 = arith.mulf %11, %11 : vector<16x32xf32>
    %cst_10 = arith.constant dense<0.000000e+00> : vector<16xf32>
    %13 = vector.multi_reduction <add>, %12, %cst_10 [1] : vector<16x32xf32> to vector<16xf32>
    %14 = vector.shape_cast %13 : vector<16xf32> to vector<16x1xf32>
    %cst_11 = arith.constant 0.0322580636 : f32
    %15 = vector.broadcast %cst_11 : f32 to vector<16x1xf32>
    %16 = arith.mulf %14, %15 : vector<16x1xf32>
    %17 = math.sqrt %16 : vector<16x1xf32>
    %cst_12 = arith.constant 9.99999997E-7 : f32
    %18 = vector.broadcast %cst_12 : f32 to vector<16x1xf32>
    %19 = arith.addf %17, %18 : vector<16x1xf32>
    %20 = tpu.reciprocal %19 {approx = true} : vector<16x1xf32> -> vector<16x1xf32>
    %21 = vector.broadcast %20 : vector<16x1xf32> to vector<16x32xf32>
    %22 = arith.mulf %11, %21 : vector<16x32xf32>
    %23 = vector.broadcast %4 : vector<1x32xf32> to vector<16x32xf32>
    %24 = arith.mulf %23, %22 : vector<16x32xf32>
    %25 = vector.broadcast %5 : vector<1x32xf32> to vector<16x32xf32>
    %26 = arith.addf %24, %25 : vector<16x32xf32>
    %27 = arith.truncf %26 : vector<16x32xf32> to vector<16x32xbf16>
    %c0_13 = arith.constant 0 : index
    %c0_14 = arith.constant 0 : index
    %28 = vector.load %arg5[%c0_13, %c0_14] : memref<32x32xbf16, #tpu.memory_space<vmem>>, vector<32x32xbf16>
    %cst_15 = arith.constant dense<0.000000e+00> : vector<16x32xf32>
    %29 = tpu.matmul %27, %28, %cst_15 {dimension_numbers = #tpu.dot_dimension_numbers<[1], [0], [0], [1], [0, 0, 1, 1], [], []>} : vector<16x32xbf16>, vector<32x32xbf16>, vector<16x32xf32> -> vector<16x32xf32>
    %c0_16 = arith.constant 0 : index
    %c0_17 = arith.constant 0 : index
    %30 = vector.load %arg6[%c0_16, %c0_17] : memref<1x32xf32, #tpu.memory_space<vmem>>, vector<1x32xf32>
    %31 = vector.broadcast %30 : vector<1x32xf32> to vector<16x32xf32>
    %32 = arith.addf %29, %31 : vector<16x32xf32>
    %cst_18 = arith.constant 0.353553385 : f32
    %33 = vector.broadcast %cst_18 : f32 to vector<16x32xf32>
    %34 = arith.mulf %32, %33 : vector<16x32xf32>
    %c0_19 = arith.constant 0 : index
    %c0_20 = arith.constant 0 : index
    %35 = vector.load %arg7[%c0_19, %c0_20] : memref<32x32xbf16, #tpu.memory_space<vmem>>, vector<32x32xbf16>
    %cst_21 = arith.constant dense<0.000000e+00> : vector<16x32xf32>
    %36 = tpu.matmul %27, %35, %cst_21 {dimension_numbers = #tpu.dot_dimension_numbers<[1], [0], [0], [1], [0, 0, 1, 1], [], []>} : vector<16x32xbf16>, vector<32x32xbf16>, vector<16x32xf32> -> vector<16x32xf32>
    %c0_22 = arith.constant 0 : index
    %c0_23 = arith.constant 0 : index
    %37 = vector.load %arg8[%c0_22, %c0_23] : memref<1x32xf32, #tpu.memory_space<vmem>>, vector<1x32xf32>
    %38 = vector.broadcast %37 : vector<1x32xf32> to vector<16x32xf32>
    %39 = arith.addf %36, %38 : vector<16x32xf32>
    %c0_24 = arith.constant 0 : index
    %c0_25 = arith.constant 0 : index
    %40 = vector.load %arg9[%c0_24, %c0_25] : memref<32x32xbf16, #tpu.memory_space<vmem>>, vector<32x32xbf16>
    %cst_26 = arith.constant dense<0.000000e+00> : vector<16x32xf32>
    %41 = tpu.matmul %27, %40, %cst_26 {dimension_numbers = #tpu.dot_dimension_numbers<[1], [0], [0], [1], [0, 0, 1, 1], [], []>} : vector<16x32xbf16>, vector<32x32xbf16>, vector<16x32xf32> -> vector<16x32xf32>
    %c0_27 = arith.constant 0 : index
    %c0_28 = arith.constant 0 : index
    %42 = vector.load %arg10[%c0_27, %c0_28] : memref<1x32xf32, #tpu.memory_space<vmem>>, vector<1x32xf32>
    %43 = vector.broadcast %42 : vector<1x32xf32> to vector<16x32xf32>
    %44 = arith.addf %41, %43 : vector<16x32xf32>
    %45 = arith.truncf %34 : vector<16x32xf32> to vector<16x32xbf16>
    %46 = arith.truncf %39 : vector<16x32xf32> to vector<16x32xbf16>
    %47 = arith.truncf %44 : vector<16x32xf32> to vector<16x32xbf16>
    %c0_29 = arith.constant 0 : index
    %c0_30 = arith.constant 0 : index
    %48 = vector.load %arg12[%c0_29, %c0_30] : memref<1x32xf32, #tpu.memory_space<vmem>>, vector<1x32xf32>
    %49 = vector.extract_strided_slice %45 {offsets = [0, 0], sizes = [16, 8], strides = [1, 1]} : vector<16x32xbf16> to vector<16x8xbf16>
    %50 = vector.extract_strided_slice %46 {offsets = [0, 0], sizes = [16, 8], strides = [1, 1]} : vector<16x32xbf16> to vector<16x8xbf16>
    %51 = vector.extract_strided_slice %47 {offsets = [0, 0], sizes = [16, 8], strides = [1, 1]} : vector<16x32xbf16> to vector<16x8xbf16>
    %cst_31 = arith.constant dense<0.000000e+00> : vector<16x16xf32>
    %52 = tpu.matmul %49, %50, %cst_31 {dimension_numbers = #tpu.dot_dimension_numbers<[1], [1], [0], [0], [0, 0, 1, 0], [], []>} : vector<16x8xbf16>, vector<16x8xbf16>, vector<16x16xf32> -> vector<16x16xf32>
    %53 = arith.addf %52, %3 : vector<16x16xf32>
    %cst_32 = arith.constant dense<0xFF800000> : vector<16xf32>
    %54 = vector.multi_reduction <maximumf>, %53, %cst_32 [1] : vector<16x16xf32> to vector<16xf32>
    %55 = vector.shape_cast %54 : vector<16xf32> to vector<16x1xf32>
    %56 = vector.broadcast %55 : vector<16x1xf32> to vector<16x16xf32>
    %57 = arith.subf %53, %56 : vector<16x16xf32>
    %58 = math.exp %57 : vector<16x16xf32>
    %cst_33 = arith.constant dense<0.000000e+00> : vector<16xf32>
    %59 = vector.multi_reduction <add>, %58, %cst_33 [1] : vector<16x16xf32> to vector<16xf32>
    %60 = vector.shape_cast %59 : vector<16xf32> to vector<16x1xf32>
    %61 = tpu.reciprocal %60 {approx = true} : vector<16x1xf32> -> vector<16x1xf32>
    %62 = vector.broadcast %61 : vector<16x1xf32> to vector<16x16xf32>
    %63 = arith.mulf %58, %62 : vector<16x16xf32>
    %64 = arith.truncf %63 : vector<16x16xf32> to vector<16x16xbf16>
    %cst_34 = arith.constant dense<0.000000e+00> : vector<16x8xf32>
    %65 = tpu.matmul %64, %51, %cst_34 {dimension_numbers = #tpu.dot_dimension_numbers<[1], [0], [0], [1], [0, 0, 1, 1], [], []>} : vector<16x16xbf16>, vector<16x8xbf16>, vector<16x8xf32> -> vector<16x8xf32>
    %66 = arith.truncf %65 : vector<16x8xf32> to vector<16x8xbf16>
    %c0_35 = arith.constant 0 : index
    %c0_36 = arith.constant 0 : index
    %67 = vector.load %arg11[%c0_35, %c0_36] : memref<32x32xbf16, #tpu.memory_space<vmem>>, vector<8x32xbf16>
    %cst_37 = arith.constant dense<0.000000e+00> : vector<16x32xf32>
    %68 = tpu.matmul %66, %67, %cst_37 {dimension_numbers = #tpu.dot_dimension_numbers<[1], [0], [0], [1], [0, 0, 1, 1], [], []>} : vector<16x8xbf16>, vector<8x32xbf16>, vector<16x32xf32> -> vector<16x32xf32>
    %69 = vector.broadcast %48 : vector<1x32xf32> to vector<16x32xf32>
    %70 = arith.addf %69, %68 : vector<16x32xf32>
    %71 = vector.extract_strided_slice %45 {offsets = [0, 8], sizes = [16, 8], strides = [1, 1]} : vector<16x32xbf16> to vector<16x8xbf16>
    %72 = vector.extract_strided_slice %46 {offsets = [0, 8], sizes = [16, 8], strides = [1, 1]} : vector<16x32xbf16> to vector<16x8xbf16>
    %73 = vector.extract_strided_slice %47 {offsets = [0, 8], sizes = [16, 8], strides = [1, 1]} : vector<16x32xbf16> to vector<16x8xbf16>
    %cst_38 = arith.constant dense<0.000000e+00> : vector<16x16xf32>
    %74 = tpu.matmul %71, %72, %cst_38 {dimension_numbers = #tpu.dot_dimension_numbers<[1], [1], [0], [0], [0, 0, 1, 0], [], []>} : vector<16x8xbf16>, vector<16x8xbf16>, vector<16x16xf32> -> vector<16x16xf32>
    %75 = arith.addf %74, %3 : vector<16x16xf32>
    %cst_39 = arith.constant dense<0xFF800000> : vector<16xf32>
    %76 = vector.multi_reduction <maximumf>, %75, %cst_39 [1] : vector<16x16xf32> to vector<16xf32>
    %77 = vector.shape_cast %76 : vector<16xf32> to vector<16x1xf32>
    %78 = vector.broadcast %77 : vector<16x1xf32> to vector<16x16xf32>
    %79 = arith.subf %75, %78 : vector<16x16xf32>
    %80 = math.exp %79 : vector<16x16xf32>
    %cst_40 = arith.constant dense<0.000000e+00> : vector<16xf32>
    %81 = vector.multi_reduction <add>, %80, %cst_40 [1] : vector<16x16xf32> to vector<16xf32>
    %82 = vector.shape_cast %81 : vector<16xf32> to vector<16x1xf32>
    %83 = tpu.reciprocal %82 {approx = true} : vector<16x1xf32> -> vector<16x1xf32>
    %84 = vector.broadcast %83 : vector<16x1xf32> to vector<16x16xf32>
    %85 = arith.mulf %80, %84 : vector<16x16xf32>
    %86 = arith.truncf %85 : vector<16x16xf32> to vector<16x16xbf16>
    %cst_41 = arith.constant dense<0.000000e+00> : vector<16x8xf32>
    %87 = tpu.matmul %86, %73, %cst_41 {dimension_numbers = #tpu.dot_dimension_numbers<[1], [0], [0], [1], [0, 0, 1, 1], [], []>} : vector<16x16xbf16>, vector<16x8xbf16>, vector<16x8xf32> -> vector<16x8xf32>
    %88 = arith.truncf %87 : vector<16x8xf32> to vector<16x8xbf16>
    %c8 = arith.constant 8 : index
    %c0_42 = arith.constant 0 : index
    %89 = vector.load %arg11[%c8, %c0_42] : memref<32x32xbf16, #tpu.memory_space<vmem>>, vector<8x32xbf16>
    %cst_43 = arith.constant dense<0.000000e+00> : vector<16x32xf32>
    %90 = tpu.matmul %88, %89, %cst_43 {dimension_numbers = #tpu.dot_dimension_numbers<[1], [0], [0], [1], [0, 0, 1, 1], [], []>} : vector<16x8xbf16>, vector<8x32xbf16>, vector<16x32xf32> -> vector<16x32xf32>
    %91 = arith.addf %70, %90 : vector<16x32xf32>
    %92 = vector.extract_strided_slice %45 {offsets = [0, 16], sizes = [16, 8], strides = [1, 1]} : vector<16x32xbf16> to vector<16x8xbf16>
    %93 = vector.extract_strided_slice %46 {offsets = [0, 16], sizes = [16, 8], strides = [1, 1]} : vector<16x32xbf16> to vector<16x8xbf16>
    %94 = vector.extract_strided_slice %47 {offsets = [0, 16], sizes = [16, 8], strides = [1, 1]} : vector<16x32xbf16> to vector<16x8xbf16>
    %cst_44 = arith.constant dense<0.000000e+00> : vector<16x16xf32>
    %95 = tpu.matmul %92, %93, %cst_44 {dimension_numbers = #tpu.dot_dimension_numbers<[1], [1], [0], [0], [0, 0, 1, 0], [], []>} : vector<16x8xbf16>, vector<16x8xbf16>, vector<16x16xf32> -> vector<16x16xf32>
    %96 = arith.addf %95, %3 : vector<16x16xf32>
    %cst_45 = arith.constant dense<0xFF800000> : vector<16xf32>
    %97 = vector.multi_reduction <maximumf>, %96, %cst_45 [1] : vector<16x16xf32> to vector<16xf32>
    %98 = vector.shape_cast %97 : vector<16xf32> to vector<16x1xf32>
    %99 = vector.broadcast %98 : vector<16x1xf32> to vector<16x16xf32>
    %100 = arith.subf %96, %99 : vector<16x16xf32>
    %101 = math.exp %100 : vector<16x16xf32>
    %cst_46 = arith.constant dense<0.000000e+00> : vector<16xf32>
    %102 = vector.multi_reduction <add>, %101, %cst_46 [1] : vector<16x16xf32> to vector<16xf32>
    %103 = vector.shape_cast %102 : vector<16xf32> to vector<16x1xf32>
    %104 = tpu.reciprocal %103 {approx = true} : vector<16x1xf32> -> vector<16x1xf32>
    %105 = vector.broadcast %104 : vector<16x1xf32> to vector<16x16xf32>
    %106 = arith.mulf %101, %105 : vector<16x16xf32>
    %107 = arith.truncf %106 : vector<16x16xf32> to vector<16x16xbf16>
    %cst_47 = arith.constant dense<0.000000e+00> : vector<16x8xf32>
    %108 = tpu.matmul %107, %94, %cst_47 {dimension_numbers = #tpu.dot_dimension_numbers<[1], [0], [0], [1], [0, 0, 1, 1], [], []>} : vector<16x16xbf16>, vector<16x8xbf16>, vector<16x8xf32> -> vector<16x8xf32>
    %109 = arith.truncf %108 : vector<16x8xf32> to vector<16x8xbf16>
    %c16 = arith.constant 16 : index
    %c0_48 = arith.constant 0 : index
    %110 = vector.load %arg11[%c16, %c0_48] : memref<32x32xbf16, #tpu.memory_space<vmem>>, vector<8x32xbf16>
    %cst_49 = arith.constant dense<0.000000e+00> : vector<16x32xf32>
    %111 = tpu.matmul %109, %110, %cst_49 {dimension_numbers = #tpu.dot_dimension_numbers<[1], [0], [0], [1], [0, 0, 1, 1], [], []>} : vector<16x8xbf16>, vector<8x32xbf16>, vector<16x32xf32> -> vector<16x32xf32>
    %112 = arith.addf %91, %111 : vector<16x32xf32>
    %113 = vector.extract_strided_slice %45 {offsets = [0, 24], sizes = [16, 8], strides = [1, 1]} : vector<16x32xbf16> to vector<16x8xbf16>
    %114 = vector.extract_strided_slice %46 {offsets = [0, 24], sizes = [16, 8], strides = [1, 1]} : vector<16x32xbf16> to vector<16x8xbf16>
    %115 = vector.extract_strided_slice %47 {offsets = [0, 24], sizes = [16, 8], strides = [1, 1]} : vector<16x32xbf16> to vector<16x8xbf16>
    %cst_50 = arith.constant dense<0.000000e+00> : vector<16x16xf32>
    %116 = tpu.matmul %113, %114, %cst_50 {dimension_numbers = #tpu.dot_dimension_numbers<[1], [1], [0], [0], [0, 0, 1, 0], [], []>} : vector<16x8xbf16>, vector<16x8xbf16>, vector<16x16xf32> -> vector<16x16xf32>
    %117 = arith.addf %116, %3 : vector<16x16xf32>
    %cst_51 = arith.constant dense<0xFF800000> : vector<16xf32>
    %118 = vector.multi_reduction <maximumf>, %117, %cst_51 [1] : vector<16x16xf32> to vector<16xf32>
    %119 = vector.shape_cast %118 : vector<16xf32> to vector<16x1xf32>
    %120 = vector.broadcast %119 : vector<16x1xf32> to vector<16x16xf32>
    %121 = arith.subf %117, %120 : vector<16x16xf32>
    %122 = math.exp %121 : vector<16x16xf32>
    %cst_52 = arith.constant dense<0.000000e+00> : vector<16xf32>
    %123 = vector.multi_reduction <add>, %122, %cst_52 [1] : vector<16x16xf32> to vector<16xf32>
    %124 = vector.shape_cast %123 : vector<16xf32> to vector<16x1xf32>
    %125 = tpu.reciprocal %124 {approx = true} : vector<16x1xf32> -> vector<16x1xf32>
    %126 = vector.broadcast %125 : vector<16x1xf32> to vector<16x16xf32>
    %127 = arith.mulf %122, %126 : vector<16x16xf32>
    %128 = arith.truncf %127 : vector<16x16xf32> to vector<16x16xbf16>
    %cst_53 = arith.constant dense<0.000000e+00> : vector<16x8xf32>
    %129 = tpu.matmul %128, %115, %cst_53 {dimension_numbers = #tpu.dot_dimension_numbers<[1], [0], [0], [1], [0, 0, 1, 1], [], []>} : vector<16x16xbf16>, vector<16x8xbf16>, vector<16x8xf32> -> vector<16x8xf32>
    %130 = arith.truncf %129 : vector<16x8xf32> to vector<16x8xbf16>
    %c24 = arith.constant 24 : index
    %c0_54 = arith.constant 0 : index
    %131 = vector.load %arg11[%c24, %c0_54] : memref<32x32xbf16, #tpu.memory_space<vmem>>, vector<8x32xbf16>
    %cst_55 = arith.constant dense<0.000000e+00> : vector<16x32xf32>
    %132 = tpu.matmul %130, %131, %cst_55 {dimension_numbers = #tpu.dot_dimension_numbers<[1], [0], [0], [1], [0, 0, 1, 1], [], []>} : vector<16x8xbf16>, vector<8x32xbf16>, vector<16x32xf32> -> vector<16x32xf32>
    %133 = arith.addf %112, %132 : vector<16x32xf32>
    %134 = arith.addf %1, %133 : vector<16x32xf32>
    %c0_56 = arith.constant 0 : index
    %c0_57 = arith.constant 0 : index
    %135 = vector.load %arg13[%c0_56, %c0_57] : memref<1x32xf32, #tpu.memory_space<vmem>>, vector<1x32xf32>
    %c0_58 = arith.constant 0 : index
    %c0_59 = arith.constant 0 : index
    %136 = vector.load %arg14[%c0_58, %c0_59] : memref<1x32xf32, #tpu.memory_space<vmem>>, vector<1x32xf32>
    %cst_60 = arith.constant dense<0.000000e+00> : vector<16xf32>
    %137 = vector.multi_reduction <add>, %134, %cst_60 [1] : vector<16x32xf32> to vector<16xf32>
    %138 = vector.shape_cast %137 : vector<16xf32> to vector<16x1xf32>
    %cst_61 = arith.constant 3.200000e+01 : f32
    %139 = vector.broadcast %cst_61 : f32 to vector<16x1xf32>
    %140 = arith.divf %138, %139 : vector<16x1xf32>
    %141 = vector.broadcast %140 : vector<16x1xf32> to vector<16x32xf32>
    %142 = arith.subf %134, %141 : vector<16x32xf32>
    %143 = arith.mulf %142, %142 : vector<16x32xf32>
    %cst_62 = arith.constant dense<0.000000e+00> : vector<16xf32>
    %144 = vector.multi_reduction <add>, %143, %cst_62 [1] : vector<16x32xf32> to vector<16xf32>
    %145 = vector.shape_cast %144 : vector<16xf32> to vector<16x1xf32>
    %cst_63 = arith.constant 0.0322580636 : f32
    %146 = vector.broadcast %cst_63 : f32 to vector<16x1xf32>
    %147 = arith.mulf %145, %146 : vector<16x1xf32>
    %148 = math.sqrt %147 : vector<16x1xf32>
    %cst_64 = arith.constant 9.99999997E-7 : f32
    %149 = vector.broadcast %cst_64 : f32 to vector<16x1xf32>
    %150 = arith.addf %148, %149 : vector<16x1xf32>
    %151 = tpu.reciprocal %150 {approx = true} : vector<16x1xf32> -> vector<16x1xf32>
    %152 = vector.broadcast %151 : vector<16x1xf32> to vector<16x32xf32>
    %153 = arith.mulf %142, %152 : vector<16x32xf32>
    %154 = vector.broadcast %135 : vector<1x32xf32> to vector<16x32xf32>
    %155 = arith.mulf %154, %153 : vector<16x32xf32>
    %156 = vector.broadcast %136 : vector<1x32xf32> to vector<16x32xf32>
    %157 = arith.addf %155, %156 : vector<16x32xf32>
    %158 = arith.truncf %157 : vector<16x32xf32> to vector<16x32xbf16>
    %c0_65 = arith.constant 0 : index
    %c0_66 = arith.constant 0 : index
    %159 = vector.load %arg15[%c0_65, %c0_66] : memref<32x64xbf16, #tpu.memory_space<vmem>>, vector<32x64xbf16>
    %cst_67 = arith.constant dense<0.000000e+00> : vector<16x64xf32>
    %160 = tpu.matmul %158, %159, %cst_67 {dimension_numbers = #tpu.dot_dimension_numbers<[1], [0], [0], [1], [0, 0, 1, 1], [], []>} : vector<16x32xbf16>, vector<32x64xbf16>, vector<16x64xf32> -> vector<16x64xf32>
    %c0_68 = arith.constant 0 : index
    %c0_69 = arith.constant 0 : index
    %161 = vector.load %arg16[%c0_68, %c0_69] : memref<1x64xf32, #tpu.memory_space<vmem>>, vector<1x64xf32>
    %162 = vector.broadcast %161 : vector<1x64xf32> to vector<16x64xf32>
    %163 = arith.addf %160, %162 : vector<16x64xf32>
    %cst_70 = arith.constant 5.000000e-01 : f32
    %164 = vector.broadcast %cst_70 : f32 to vector<16x64xf32>
    %165 = arith.mulf %164, %163 : vector<16x64xf32>
    %cst_71 = arith.constant 4.471500e-02 : f32
    %166 = vector.broadcast %cst_71 : f32 to vector<16x64xf32>
    %167 = arith.mulf %166, %163 : vector<16x64xf32>
    %168 = arith.mulf %167, %163 : vector<16x64xf32>
    %169 = arith.mulf %168, %163 : vector<16x64xf32>
    %170 = arith.addf %163, %169 : vector<16x64xf32>
    %cst_72 = arith.constant 0.797884583 : f32
    %171 = vector.broadcast %cst_72 : f32 to vector<16x64xf32>
    %172 = arith.mulf %171, %170 : vector<16x64xf32>
    %173 = math.tanh %172 : vector<16x64xf32>
    %cst_73 = arith.constant 1.000000e+00 : f32
    %174 = vector.broadcast %cst_73 : f32 to vector<16x64xf32>
    %175 = arith.addf %174, %173 : vector<16x64xf32>
    %176 = arith.mulf %165, %175 : vector<16x64xf32>
    %177 = arith.truncf %176 : vector<16x64xf32> to vector<16x64xbf16>
    %c0_74 = arith.constant 0 : index
    %c0_75 = arith.constant 0 : index
    %178 = vector.load %arg17[%c0_74, %c0_75] : memref<64x32xbf16, #tpu.memory_space<vmem>>, vector<64x32xbf16>
    %cst_76 = arith.constant dense<0.000000e+00> : vector<16x32xf32>
    %179 = tpu.matmul %177, %178, %cst_76 {dimension_numbers = #tpu.dot_dimension_numbers<[1], [0], [0], [1], [0, 0, 1, 1], [], []>} : vector<16x64xbf16>, vector<64x32xbf16>, vector<16x32xf32> -> vector<16x32xf32>
    %c0_77 = arith.constant 0 : index
    %c0_78 = arith.constant 0 : index
    %180 = vector.load %arg18[%c0_77, %c0_78] : memref<1x32xf32, #tpu.memory_space<vmem>>, vector<1x32xf32>
    %181 = vector.broadcast %180 : vector<1x32xf32> to vector<16x32xf32>
    %182 = arith.addf %179, %181 : vector<16x32xf32>
    %183 = arith.addf %134, %182 : vector<16x32xf32>
    %c0_79 = arith.constant 0 : index
    %c0_80 = arith.constant 0 : index
    %c0_81 = arith.constant 0 : index
    %184 = vector.load %arg19[%c0_79, %c0_80, %c0_81] : memref<1x16x32xf32, #tpu.memory_space<vmem>>, vector<1x16x32xf32>
    %185 = vector.shape_cast %184 : vector<1x16x32xf32> to vector<16x32xf32>
    %186 = vector.shape_cast %183 : vector<16x32xf32> to vector<1x16x32xf32>
    tpu.vector_store %arg19[%c0_79, %c0_80, %c0_81], %186 {strides = array<i32>} : memref<1x16x32xf32, #tpu.memory_space<vmem>>, vector<1x16x32xf32>,
    return
  }
  func.func @transform_0(%arg0: i32) -> (i32, i32, i32) {
    %c0_i32 = arith.constant 0 : i32
    %c0_i32_0 = arith.constant 0 : i32
    %c0_i32_1 = arith.constant 0 : i32
    return %arg0, %c0_i32, %c0_i32_0 : i32, i32, i32
  }
  func.func @transform_1(%arg0: i32) -> (i32, i32, i32) {
    %c0_i32 = arith.constant 0 : i32
    %c0_i32_0 = arith.constant 0 : i32
    %c0_i32_1 = arith.constant 0 : i32
    return %arg0, %c0_i32, %c0_i32_0 : i32, i32, i32
  }
  func.func @transform_2(%arg0: i32) -> (i32, i32) {
    %c0_i32 = arith.constant 0 : i32
    %c0_i32_0 = arith.constant 0 : i32
    %c0_i32_1 = arith.constant 0 : i32
    return %c0_i32, %c0_i32_0 : i32, i32
  }
  func.func @transform_3(%arg0: i32) -> (i32, i32) {
    %c0_i32 = arith.constant 0 : i32
    %c0_i32_0 = arith.constant 0 : i32
    %c0_i32_1 = arith.constant 0 : i32
    return %c0_i32, %c0_i32_0 : i32, i32
  }
  func.func @transform_4(%arg0: i32) -> (i32, i32) {
    %c0_i32 = arith.constant 0 : i32
    %c0_i32_0 = arith.constant 0 : i32
    %c0_i32_1 = arith.constant 0 : i32
    return %c0_i32, %c0_i32_0 : i32, i32
  }
  func.func @transform_5(%arg0: i32) -> (i32, i32) {
    %c0_i32 = arith.constant 0 : i32
    %c0_i32_0 = arith.constant 0 : i32
    %c0_i32_1 = arith.constant 0 : i32
    return %c0_i32, %c0_i32_0 : i32, i32
  }
  func.func @transform_6(%arg0: i32) -> (i32, i32) {
    %c0_i32 = arith.constant 0 : i32
    %c0_i32_0 = arith.constant 0 : i32
    %c0_i32_1 = arith.constant 0 : i32
    return %c0_i32, %c0_i32_0 : i32, i32
  }
  func.func @transform_7(%arg0: i32) -> (i32, i32) {
    %c0_i32 = arith.constant 0 : i32
    %c0_i32_0 = arith.constant 0 : i32
    %c0_i32_1 = arith.constant 0 : i32
    return %c0_i32, %c0_i32_0 : i32, i32
  }
  func.func @transform_8(%arg0: i32) -> (i32, i32) {
    %c0_i32 = arith.constant 0 : i32
    %c0_i32_0 = arith.constant 0 : i32
    %c0_i32_1 = arith.constant 0 : i32
    return %c0_i32, %c0_i32_0 : i32, i32
  }
  func.func @transform_9(%arg0: i32) -> (i32, i32) {
    %c0_i32 = arith.constant 0 : i32
    %c0_i32_0 = arith.constant 0 : i32
    %c0_i32_1 = arith.constant 0 : i32
    return %c0_i32, %c0_i32_0 : i32, i32
  }
  func.func @transform_10(%arg0: i32) -> (i32, i32) {
    %c0_i32 = arith.constant 0 : i32
    %c0_i32_0 = arith.constant 0 : i32
    %c0_i32_1 = arith.constant 0 : i32
    return %c0_i32, %c0_i32_0 : i32, i32
  }
  func.func @transform_11(%arg0: i32) -> (i32, i32) {
    %c0_i32 = arith.constant 0 : i32
    %c0_i32_0 = arith.constant 0 : i32
    %c0_i32_1 = arith.constant 0 : i32
    return %c0_i32, %c0_i32_0 : i32, i32
  }
  func.func @transform_12(%arg0: i32) -> (i32, i32) {
    %c0_i32 = arith.constant 0 : i32
    %c0_i32_0 = arith.constant 0 : i32
    %c0_i32_1 = arith.constant 0 : i32
    return %c0_i32, %c0_i32_0 : i32, i32
  }
  func.func @transform_13(%arg0: i32) -> (i32, i32) {
    %c0_i32 = arith.constant 0 : i32
    %c0_i32_0 = arith.constant 0 : i32
    %c0_i32_1 = arith.constant 0 : i32
    return %c0_i32, %c0_i32_0 : i32, i32
  }
  func.func @transform_14(%arg0: i32) -> (i32, i32) {
    %c0_i32 = arith.constant 0 : i32
    %c0_i32_0 = arith.constant 0 : i32
    %c0_i32_1 = arith.constant 0 : i32
    return %c0_i32, %c0_i32_0 : i32, i32
  }
  func.func @transform_15(%arg0: i32) -> (i32, i32) {
    %c0_i32 = arith.constant 0 : i32
    %c0_i32_0 = arith.constant 0 : i32
    %c0_i32_1 = arith.constant 0 : i32
    return %c0_i32, %c0_i32_0 : i32, i32
  }
  func.func @transform_16(%arg0: i32) -> (i32, i32) {
    %c0_i32 = arith.constant 0 : i32
    %c0_i32_0 = arith.constant 0 : i32
    %c0_i32_1 = arith.constant 0 : i32
    return %c0_i32, %c0_i32_0 : i32, i32
  }
  func.func @transform_17(%arg0: i32) -> (i32, i32) {
    %c0_i32 = arith.constant 0 : i32
    %c0_i32_0 = arith.constant 0 : i32
    %c0_i32_1 = arith.constant 0 : i32
    return %c0_i32, %c0_i32_0 : i32, i32
  }
  func.func @transform_18(%arg0: i32) -> (i32, i32, i32) {
    %c0_i32 = arith.constant 0 : i32
    %c0_i32_0 = arith.constant 0 : i32
    %c0_i32_1 = arith.constant 0 : i32
    return %arg0, %c0_i32, %c0_i32_0 : i32, i32, i32
  }
}

</mosaic_0001>

<llo_original>
// kernel: tpu_custom_call.1
$region0: #{tpu_custom_call.1}
  #allocation0 [shape = 'u32[]', space=smem, size = 0x4, offset = 0x4, fixed_abs, tag = 'smem constant byte address 0x4 - core index']
  #allocation1 [shape = 'u32[144,128]{1,0:T(1,128)}', space=vmem, size = 0x12000, scoped, tag = 'internal scratch']
  %s0 = inlined_call_operand.vmem [shape: f32[1,16,32], index: 0, kind: input, shape index: {}]
  %s1 = inlined_call_operand.vmem [shape: f32[1,16,16], index: 1, kind: input, shape index: {}]
  %s2 = inlined_call_operand.vmem [shape: f32[1,32], index: 2, kind: input, shape index: {}]
  %s3 = inlined_call_operand.hbm [shape: f32[1,32], index: 3, kind: input, shape index: {}]
  %s4 = inlined_call_operand.vmem [shape: bf16[32,32], index: 4, kind: input, shape index: {}]
  %s5 = inlined_call_operand.hbm [shape: f32[1,32], index: 5, kind: input, shape index: {}]
  %s6 = inlined_call_operand.hbm [shape: bf16[32,32], index: 6, kind: input, shape index: {}]
  %s7 = inlined_call_operand.hbm [shape: f32[1,32], index: 7, kind: input, shape index: {}]
  %s8 = inlined_call_operand.hbm [shape: bf16[32,32], index: 8, kind: input, shape index: {}]
  %s9 = inlined_call_operand.hbm [shape: f32[1,32], index: 9, kind: input, shape index: {}]
  %s10 = inlined_call_operand.vmem [shape: bf16[32,32], index: 10, kind: input, shape index: {}]
  %s11 = inlined_call_operand.hbm [shape: f32[1,32], index: 11, kind: input, shape index: {}]
  %s12 = inlined_call_operand.hbm [shape: f32[1,32], index: 12, kind: input, shape index: {}]
  %s13 = inlined_call_operand.hbm [shape: f32[1,32], index: 13, kind: input, shape index: {}]
  %s14 = inlined_call_operand.vmem [shape: bf16[32,64], index: 14, kind: input, shape index: {}]
  %s15 = inlined_call_operand.vmem [shape: f32[1,64], index: 15, kind: input, shape index: {}]
  %s16 = inlined_call_operand.vmem [shape: bf16[64,32], index: 16, kind: input, shape index: {}]
  %s17 = inlined_call_operand.vmem [shape: f32[1,32], index: 17, kind: input, shape index: {}]
  %s18 = inlined_call_operand.hbm [shape: f32[1,16,32], index: 18, kind: output, shape index: {}]
  %s19 = sld [smem:[#allocation0]]
  $region118: #{tpu_custom_call.1} parent=0
    _
  %s21 = ssub.s32 1, %s19
  %s22 = scalar_select 0, %s21, %s19
  $region1: #{tpu_custom_call.1} parent=0
    #allocation2 [shape = 'u8[512]{0}', space=vmem, size = 0x400, scoped, tag = 'input window, operand 3, single buffered']
    #allocation3 [shape = 's32[1]{0}', space=sflag, size = 0x4, scoped, tag = 'scoped memory for tpu_custom_call.1']
    #allocation4 [shape = 's32[1]{0}', space=sflag, size = 0x4, scoped, tag = 'scoped memory for tpu_custom_call.1']
    #allocation5 [shape = 'u8[512]{0}', space=vmem, size = 0x400, scoped, tag = 'input window, operand 5, single buffered']
    #allocation6 [shape = 's32[1]{0}', space=sflag, size = 0x4, scoped, tag = 'scoped memory for tpu_custom_call.1']
    #allocation7 [shape = 'u8[8192]{0}', space=vmem, size = 0x2000, scoped, tag = 'input window, operand 6, single buffered']
    #allocation8 [shape = 'u8[512]{0}', space=vmem, size = 0x400, scoped, tag = 'input window, operand 7, single buffered']
    #allocation9 [shape = 's32[1]{0}', space=sflag, size = 0x4, scoped, tag = 'scoped memory for tpu_custom_call.1']
    #allocation10 [shape = 'u8[8192]{0}', space=vmem, size = 0x2000, scoped, tag = 'input window, operand 8, single buffered']
    #allocation11 [shape = 'u8[512]{0}', space=vmem, size = 0x400, scoped, tag = 'input window, operand 9, single buffered']
    #allocation12 [shape = 's32[1]{0}', space=sflag, size = 0x4, scoped, tag = 'scoped memory for tpu_custom_call.1']
    #allocation13 [shape = 'u8[512]{0}', space=vmem, size = 0x400, scoped, tag = 'input window, operand 11, single buffered']
    #allocation14 [shape = 'u8[512]{0}', space=vmem, size = 0x400, scoped, tag = 'input window, operand 12, single buffered']
    #allocation15 [shape = 's32[1]{0}', space=sflag, size = 0x4, scoped, tag = 'scoped memory for tpu_custom_call.1']
    #allocation16 [shape = 'u8[512]{0}', space=vmem, size = 0x400, scoped, tag = 'input window, operand 13, single buffered']
    #allocation17 [shape = 'u8[8192]{0}', space=vmem, size = 0x2000, scoped, tag = 'output window, operand 0, single buffered']
    %23 = vsyncpa [#allocation3], 0
    %24 = vsyncpa [#allocation6], 0
    %25 = vsyncpa [#allocation9], 0
    %26 = vsyncpa [#allocation12], 0
    %27 = vsyncpa [#allocation15], 0
    %28 = vsyncpa [#allocation4], 0
    // Predicated region
    $region2: #{tpu_custom_call.1} parent=1 // pred_check
      _
    $region3: #{tpu_custom_call.1} parent=1 // pred_check_branch
      %30 = sbr.rel (0) target = $region5
    $region4: #{tpu_custom_call.1} parent=1 // pred_region
      _
    $region5: #{tpu_custom_call.1} parent=1 // pred_fallthru
      _
    // Predicated region
    $region6: #{tpu_custom_call.1} parent=1 // pred_check
      _
    $region7: #{tpu_custom_call.1} parent=1 // pred_check_branch
      %32 = sbr.rel (0) target = $region9
    $region8: #{tpu_custom_call.1} parent=1 // pred_region
      _
    $region9: #{tpu_custom_call.1} parent=1 // pred_fallthru
      _
    // Predicated region
    $region10: #{tpu_custom_call.1} parent=1 // pred_check
      _
    $region11: #{tpu_custom_call.1} parent=1 // pred_check_branch
      %34 = sbr.rel (0) target = $region13
    $region12: #{tpu_custom_call.1} parent=1 // pred_region
      _
    $region13: #{tpu_custom_call.1} parent=1 // pred_fallthru
      _
    // Predicated region
    $region14: #{tpu_custom_call.1} parent=1 // pred_check
      _
    $region15: #{tpu_custom_call.1} parent=1 // pred_check_branch
      %36 = sbr.rel (0) target = $region17
    $region16: #{tpu_custom_call.1} parent=1 // pred_region
      %s38 = ssub.s32 16, 16
      %39 = vsyncadd [#allocation3], %s38
      %s41 = sshll.u32 [#allocation2], 4
      %s42 = int_to_ptr.vmem [resolvable:$true] %s41
      %44 = dma.hbm_to_vmem [thread:$0]  %s3, 16, %s42, [#allocation3]
    $region17: #{tpu_custom_call.1} parent=1 // pred_fallthru
      _
    // Predicated region
    $region18: #{tpu_custom_call.1} parent=1 // pred_check
      _
    $region19: #{tpu_custom_call.1} parent=1 // pred_check_branch
      %46 = sbr.rel (0) target = $region21
    $region20: #{tpu_custom_call.1} parent=1 // pred_region
      _
    $region21: #{tpu_custom_call.1} parent=1 // pred_fallthru
      _
    // Predicated region
    $region22: #{tpu_custom_call.1} parent=1 // pred_check
      _
    $region23: #{tpu_custom_call.1} parent=1 // pred_check_branch
      %48 = sbr.rel (0) target = $region25
    $region24: #{tpu_custom_call.1} parent=1 // pred_region
      %s50 = ssub.s32 16, 16
      %51 = vsyncadd [#allocation6], %s50
      %s53 = sshll.u32 [#allocation5], 4
      %s54 = int_to_ptr.vmem [resolvable:$true] %s53
      %56 = dma.hbm_to_vmem [thread:$0]  %s5, 16, %s54, [#allocation6]
    $region25: #{tpu_custom_call.1} parent=1 // pred_fallthru
      _
    // Predicated region
    $region26: #{tpu_custom_call.1} parent=1 // pred_check
      _
    $region27: #{tpu_custom_call.1} parent=1 // pred_check_branch
      %58 = sbr.rel (0) target = $region29
    $region28: #{tpu_custom_call.1} parent=1 // pred_region
      %s60 = ssub.s32 256, 256
      %61 = vsyncadd [#allocation6], %s60
      %s62 = sshll.u32 [#allocation7], 4
      %s63 = int_to_ptr.vmem [resolvable:$true] %s62
      %68 = dma.hbm_to_vmem [thread:$0]  %s6, 256, %s63, [#allocation6], 64, 64, 4
    $region29: #{tpu_custom_call.1} parent=1 // pred_fallthru
      _
    // Predicated region
    $region30: #{tpu_custom_call.1} parent=1 // pred_check
      _
    $region31: #{tpu_custom_call.1} parent=1 // pred_check_branch
      %70 = sbr.rel (0) target = $region33
    $region32: #{tpu_custom_call.1} parent=1 // pred_region
      %s72 = ssub.s32 16, 16
      %73 = vsyncadd [#allocation9], %s72
      %s75 = sshll.u32 [#allocation8], 4
      %s76 = int_to_ptr.vmem [resolvable:$true] %s75
      %78 = dma.hbm_to_vmem [thread:$0]  %s7, 16, %s76, [#allocation9]
    $region33: #{tpu_custom_call.1} parent=1 // pred_fallthru
      _
    // Predicated region
    $region34: #{tpu_custom_call.1} parent=1 // pred_check
      _
    $region35: #{tpu_custom_call.1} parent=1 // pred_check_branch
      %80 = sbr.rel (0) target = $region37
    $region36: #{tpu_custom_call.1} parent=1 // pred_region
      %s82 = ssub.s32 256, 256
      %83 = vsyncadd [#allocation9], %s82
      %s84 = sshll.u32 [#allocation10], 4
      %s85 = int_to_ptr.vmem [resolvable:$true] %s84
      %90 = dma.hbm_to_vmem [thread:$0]  %s8, 256, %s85, [#allocation9], 64, 64, 4
    $region37: #{tpu_custom_call.1} parent=1 // pred_fallthru
      _
    // Predicated region
    $region38: #{tpu_custom_call.1} parent=1 // pred_check
      _
    $region39: #{tpu_custom_call.1} parent=1 // pred_check_branch
      %92 = sbr.rel (0) target = $region41
    $region40: #{tpu_custom_call.1} parent=1 // pred_region
      %s94 = ssub.s32 16, 16
      %95 = vsyncadd [#allocation12], %s94
      %s97 = sshll.u32 [#allocation11], 4
      %s98 = int_to_ptr.vmem [resolvable:$true] %s97
      %100 = dma.hbm_to_vmem [thread:$0]  %s9, 16, %s98, [#allocation12]
    $region41: #{tpu_custom_call.1} parent=1 // pred_fallthru
      _
    // Predicated region
    $region42: #{tpu_custom_call.1} parent=1 // pred_check
      _
    $region43: #{tpu_custom_call.1} parent=1 // pred_check_branch
      %102 = sbr.rel (0) target = $region45
    $region44: #{tpu_custom_call.1} parent=1 // pred_region
      _
    $region45: #{tpu_custom_call.1} parent=1 // pred_fallthru
      _
    // Predicated region
    $region46: #{tpu_custom_call.1} parent=1 // pred_check
      _
    $region47: #{tpu_custom_call.1} parent=1 // pred_check_branch
      %104 = sbr.rel (0) target = $region49
    $region48: #{tpu_custom_call.1} parent=1 // pred_region
      %s106 = ssub.s32 16, 16
      %107 = vsyncadd [#allocation12], %s106
      %s109 = sshll.u32 [#allocation13], 4
      %s110 = int_to_ptr.vmem [resolvable:$true] %s109
      %112 = dma.hbm_to_vmem [thread:$0]  %s11, 16, %s110, [#allocation12]
    $region49: #{tpu_custom_call.1} parent=1 // pred_fallthru
      _
    // Predicated region
    $region50: #{tpu_custom_call.1} parent=1 // pred_check
      _
    $region51: #{tpu_custom_call.1} parent=1 // pred_check_branch
      %114 = sbr.rel (0) target = $region53
    $region52: #{tpu_custom_call.1} parent=1 // pred_region
      %s116 = ssub.s32 16, 16
      %117 = vsyncadd [#allocation15], %s116
      %s119 = sshll.u32 [#allocation14], 4
      %s120 = int_to_ptr.vmem [resolvable:$true] %s119
      %122 = dma.hbm_to_vmem [thread:$0]  %s12, 16, %s120, [#allocation15]
    $region53: #{tpu_custom_call.1} parent=1 // pred_fallthru
      _
    // Predicated region
    $region54: #{tpu_custom_call.1} parent=1 // pred_check
      _
    $region55: #{tpu_custom_call.1} parent=1 // pred_check_branch
      %124 = sbr.rel (0) target = $region57
    $region56: #{tpu_custom_call.1} parent=1 // pred_region
      %s126 = ssub.s32 16, 16
      %127 = vsyncadd [#allocation15], %s126
      %s129 = sshll.u32 [#allocation16], 4
      %s130 = int_to_ptr.vmem [resolvable:$true] %s129
      %132 = dma.hbm_to_vmem [thread:$0]  %s13, 16, %s130, [#allocation15]
    $region57: #{tpu_custom_call.1} parent=1 // pred_fallthru
      _
    // Predicated region
    $region58: #{tpu_custom_call.1} parent=1 // pred_check
      _
    $region59: #{tpu_custom_call.1} parent=1 // pred_check_branch
      %134 = sbr.rel (0) target = $region61
    $region60: #{tpu_custom_call.1} parent=1 // pred_region
      _
    $region61: #{tpu_custom_call.1} parent=1 // pred_fallthru
      _
    // Predicated region
    $region62: #{tpu_custom_call.1} parent=1 // pred_check
      _
    $region63: #{tpu_custom_call.1} parent=1 // pred_check_branch
      %136 = sbr.rel (0) target = $region65
    $region64: #{tpu_custom_call.1} parent=1 // pred_region
      _
    $region65: #{tpu_custom_call.1} parent=1 // pred_fallthru
      _
    // Predicated region
    $region66: #{tpu_custom_call.1} parent=1 // pred_check
      _
    $region67: #{tpu_custom_call.1} parent=1 // pred_check_branch
      %138 = sbr.rel (0) target = $region69
    $region68: #{tpu_custom_call.1} parent=1 // pred_region
      _
    $region69: #{tpu_custom_call.1} parent=1 // pred_fallthru
      _
    // Predicated region
    $region70: #{tpu_custom_call.1} parent=1 // pred_check
      _
    $region71: #{tpu_custom_call.1} parent=1 // pred_check_branch
      %140 = sbr.rel (0) target = $region73
    $region72: #{tpu_custom_call.1} parent=1 // pred_region
      _
    $region73: #{tpu_custom_call.1} parent=1 // pred_fallthru
      _
    // Predicated region
    $region74: #{tpu_custom_call.1} parent=1 // pred_check
      _
    $region75: #{tpu_custom_call.1} parent=1 // pred_check_branch
      %142 = sbr.rel (0) target = $region77
    $region76: #{tpu_custom_call.1} parent=1 // pred_region
      %143 = dma.done [#allocation3], 16
    $region77: #{tpu_custom_call.1} parent=1 // pred_fallthru
      _
    // Predicated region
    $region78: #{tpu_custom_call.1} parent=1 // pred_check
      _
    $region79: #{tpu_custom_call.1} parent=1 // pred_check_branch
      %145 = sbr.rel (0) target = $region81
    $region80: #{tpu_custom_call.1} parent=1 // pred_region
      %146 = dma.done [#allocation6], 16
    $region81: #{tpu_custom_call.1} parent=1 // pred_fallthru
      _
    // Predicated region
    $region82: #{tpu_custom_call.1} parent=1 // pred_check
      _
    $region83: #{tpu_custom_call.1} parent=1 // pred_check_branch
      %148 = sbr.rel (0) target = $region85
    $region84: #{tpu_custom_call.1} parent=1 // pred_region
      %149 = dma.done [#allocation6], 256
    $region85: #{tpu_custom_call.1} parent=1 // pred_fallthru
      _
    // Predicated region
    $region86: #{tpu_custom_call.1} parent=1 // pred_check
      _
    $region87: #{tpu_custom_call.1} parent=1 // pred_check_branch
      %151 = sbr.rel (0) target = $region89
    $region88: #{tpu_custom_call.1} parent=1 // pred_region
      %152 = dma.done [#allocation9], 16
    $region89: #{tpu_custom_call.1} parent=1 // pred_fallthru
      _
    // Predicated region
    $region90: #{tpu_custom_call.1} parent=1 // pred_check
      _
    $region91: #{tpu_custom_call.1} parent=1 // pred_check_branch
      %154 = sbr.rel (0) target = $region93
    $region92: #{tpu_custom_call.1} parent=1 // pred_region
      %155 = dma.done [#allocation9], 256
    $region93: #{tpu_custom_call.1} parent=1 // pred_fallthru
      _
    // Predicated region
    $region94: #{tpu_custom_call.1} parent=1 // pred_check
      _
    $region95: #{tpu_custom_call.1} parent=1 // pred_check_branch
      %157 = sbr.rel (0) target = $region97
    $region96: #{tpu_custom_call.1} parent=1 // pred_region
      %158 = dma.done [#allocation12], 16
    $region97: #{tpu_custom_call.1} parent=1 // pred_fallthru
      _
    // Predicated region
    $region98: #{tpu_custom_call.1} parent=1 // pred_check
      _
    $region99: #{tpu_custom_call.1} parent=1 // pred_check_branch
      %160 = sbr.rel (0) target = $region101
    $region100: #{tpu_custom_call.1} parent=1 // pred_region
      %161 = dma.done [#allocation12], 16
    $region101: #{tpu_custom_call.1} parent=1 // pred_fallthru
      _
    // Predicated region
    $region102: #{tpu_custom_call.1} parent=1 // pred_check
      _
    $region103: #{tpu_custom_call.1} parent=1 // pred_check_branch
      %163 = sbr.rel (0) target = $region105
    $region104: #{tpu_custom_call.1} parent=1 // pred_region
      %164 = dma.done [#allocation15], 16
    $region105: #{tpu_custom_call.1} parent=1 // pred_fallthru
      _
    // Predicated region
    $region106: #{tpu_custom_call.1} parent=1 // pred_check
      _
    $region107: #{tpu_custom_call.1} parent=1 // pred_check_branch
      %166 = sbr.rel (0) target = $region109
    $region108: #{tpu_custom_call.1} parent=1 // pred_region
      %167 = dma.done [#allocation15], 16
    $region109: #{tpu_custom_call.1} parent=1 // pred_fallthru
      _
    %v169 = vld [vmem:[%s0] sm:$0xff]
    %v170 = vld [vmem:[%s0 + $0x8] sm:$0xff]
    %v171 = vld [vmem:[%s1] sm:$0xff]
    %v172 = vld [vmem:[%s1 + $0x8] sm:$0xff]
    %v173 = vld [vmem:[%s2] sm:$0x1]
    %v174 = vld [vmem:[#allocation2] sm:$0x1]
    %vm175 = vcmask 261120
    %v176 = vsel %vm175, %v169, 0.0
    %177 = vadd.xlane.f32.xlu0 %v176
    %v178 = vpop.xlane.xlu0 %177
    %v179 = vsel %vm175, %v170, 0.0
    %180 = vadd.xlane.f32.xlu0 %v179
    %v181 = vpop.xlane.xlu0 %180
    %v182 = vrcp.pop 32.0
    %v183 = vmul.f32 %v178, %v182
    %v184 = vmul.f32 %v181, %v182
    %v185 = vsub.f32 %v169, %v183
    %v186 = vsub.f32 %v170, %v184
    %v187 = vmul.f32 %v185, %v185
    %v188 = vmul.f32 %v186, %v186
    %v189 = vsel %vm175, %v187, 0.0
    %190 = vadd.xlane.f32.xlu0 %v189
    %v191 = vpop.xlane.xlu0 %190
    %v192 = vsel %vm175, %v188, 0.0
    %193 = vadd.xlane.f32.xlu0 %v192
    %v194 = vpop.xlane.xlu0 %193
    %v195 = vmul.f32 %v191, 0.032258064
    %v196 = vmul.f32 %v194, 0.032258064
    %v197 = vrsqrt.pop %v195
    %v198 = vmul.f32 %v195, %v197
    %vm199 = vcmp.eq.f32.partialorder %v195, inf
    %v200 = vsel %vm199, %v195, %v198
    %vm201 = vcmp.eq.f32.partialorder %v195, 0.0
    %v202 = vand.u32 %v195, 2147483648
    %v203 = vsel %vm201, %v202, %v200
    %v204 = vrsqrt.pop %v196
    %v205 = vmul.f32 %v196, %v204
    %vm206 = vcmp.eq.f32.partialorder %v196, inf
    %v207 = vsel %vm206, %v196, %v205
    %vm208 = vcmp.eq.f32.partialorder %v196, 0.0
    %v209 = vand.u32 %v196, 2147483648
    %v210 = vsel %vm208, %v209, %v207
    %v211 = vadd.f32 %v203, 1e-06
    %v212 = vadd.f32 %v210, 1e-06
    %v213 = vrcp.pop %v211
    %v214 = vrcp.pop %v212
    %v215 = vmul.f32 %v185, %v213
    %v216 = vmul.f32 %v186, %v214
    %v218 = vlaneseq
    %v219 = vshrl.u32 %v218, 7
    %v220 = vsub.s32 0, %v219
    %v221 = vrot.slane %v173, %v220
    %v223 = vmul.f32 %v221, %v215
    %v224 = vmul.f32 %v221, %v216
    %v226 = vlaneseq
    %v227 = vshrl.u32 %v226, 7
    %v228 = vsub.s32 0, %v227
    %v229 = vrot.slane %v174, %v228
    %v231 = vadd.f32 %v223, %v229
    %v232 = vadd.f32 %v224, %v229
    %v233 = vpack.c.bf16 %v232, %v231
    %v234 = vld [vmem:[%s4] sm:$0xf]
    %v235 = vld [vmem:[%s4 + $0x4] sm:$0xf]
    %v236 = vld [vmem:[%s4 + $0x8] sm:$0xf]
    %v237 = vld [vmem:[%s4 + $0xc] sm:$0xf]
    %v238 = vld [vmem:[#allocation5] sm:$0x1]
    %v240 = vlaneseq
    %v241 = vshrl.u32 %v240, 7
    %v242 = vsub.s32 0, %v241
    %v243 = vrot.slane %v238, %v242
    %v249 = vunpack.c.l.b16 %v234
    %v250 = vunpack.c.l.b16 %v235
    %v251 = vunpack.c.l.b16 %v236
    %v252 = vunpack.c.l.b16 %v237
    %v253 = vpack.c.b16 %v250, %v249
    %v254 = vpack.c.b16 %v252, %v251
    %v258 = vsel %vm175, %v233, 0
    %260 = vmatprep.subr.bf16.mxu0 0
    %261 = vmatpush1.bf16.msra.mxu0 %v253
    %262 = vmatprep.subr.bf16.mxu0 0
    %263 = vmatpush1.bf16.msra.mxu0 %v254
    %264 = vmatprep.subr.bf16.mxu0 0
    %265 = vmatpush1.bf16.msra.mxu0 0
    %266 = vmatprep.subr.bf16.mxu0 0
    %267 = vmatpush1.bf16.msra.mxu0 0
    %268 = vmatprep.subr.bf16.mxu0 0
    %269 = vmatpush1.bf16.msra.mxu0 0
    %270 = vmatprep.subr.bf16.mxu0 0
    %271 = vmatpush1.bf16.msra.mxu0 0
    %272 = vmatprep.subr.bf16.mxu0 0
    %273 = vmatpush1.bf16.msra.mxu0 0
    %274 = vmatprep.subr.bf16.mxu0 0
    %275 = vmatpush1.bf16.msra.mxu0 0
    %276 = vmatprep.subr.bf16.mxu0 0
    %277 = vmatpush1.bf16.msra.mxu0 0
    %278 = vmatprep.subr.bf16.mxu0 0
    %279 = vmatpush1.bf16.msra.mxu0 0
    %280 = vmatprep.subr.bf16.mxu0 0
    %281 = vmatpush1.bf16.msra.mxu0 0
    %282 = vmatprep.subr.bf16.mxu0 0
    %283 = vmatpush1.bf16.msra.mxu0 0
    %284 = vmatprep.subr.bf16.mxu0 0
    %285 = vmatpush1.bf16.msra.mxu0 0
    %286 = vmatprep.subr.bf16.mxu0 0
    %287 = vmatpush1.bf16.msra.mxu0 0
    %288 = vmatprep.subr.bf16.mxu0 0
    %289 = vmatpush1.bf16.msra.mxu0 0
    %290 = vmatprep.subr.bf16.mxu0 0
    %291 = vmatpush1.bf16.msra.mxu0 0
    %292 = vmatprep.mubr.bf16.mxu0 0
    %293 = vmatmul.mubr.bf16.gmra.mrb[0].mxu0 %v258
    %v294 = vpop.f32.mrb[0].mxu0
    %v295 = vadd.f32 %v243, %v294
    %v296 = vpop.f32.mrb[0].mxu0
    %v297 = vpop.f32.mrb[0].mxu0
    %v298 = vadd.f32 %v243, %v297
    %v299 = vpop.f32.mrb[0].mxu0
    %300 = vdwg.mxu0
    %v301 = vmul.f32 %v295, 0.35355338
    %v302 = vmul.f32 %v298, 0.35355338
    %v303 = vld [vmem:[#allocation7] sm:$0xf]
    %v304 = vld [vmem:[#allocation7 + $0x4] sm:$0xf]
    %v305 = vld [vmem:[#allocation7 + $0x8] sm:$0xf]
    %v306 = vld [vmem:[#allocation7 + $0xc] sm:$0xf]
    %v307 = vld [vmem:[#allocation8] sm:$0x1]
    %v309 = vlaneseq
    %v310 = vshrl.u32 %v309, 7
    %v311 = vsub.s32 0, %v310
    %v312 = vrot.slane %v307, %v311
    %v318 = vunpack.c.l.b16 %v303
    %v319 = vunpack.c.l.b16 %v304
    %v320 = vunpack.c.l.b16 %v305
    %v321 = vunpack.c.l.b16 %v306
    %v322 = vpack.c.b16 %v319, %v318
    %v323 = vpack.c.b16 %v321, %v320
    %326 = vmatprep.subr.bf16.mxu0 0
    %327 = vmatpush1.bf16.msra.mxu0 %v322
    %328 = vmatprep.subr.bf16.mxu0 0
    %329 = vmatpush1.bf16.msra.mxu0 %v323
    %330 = vmatprep.subr.bf16.mxu0 0
    %331 = vmatpush1.bf16.msra.mxu0 0
    %332 = vmatprep.subr.bf16.mxu0 0
    %333 = vmatpush1.bf16.msra.mxu0 0
    %334 = vmatprep.subr.bf16.mxu0 0
    %335 = vmatpush1.bf16.msra.mxu0 0
    %336 = vmatprep.subr.bf16.mxu0 0
    %337 = vmatpush1.bf16.msra.mxu0 0
    %338 = vmatprep.subr.bf16.mxu0 0
    %339 = vmatpush1.bf16.msra.mxu0 0
    %340 = vmatprep.subr.bf16.mxu0 0
    %341 = vmatpush1.bf16.msra.mxu0 0
    %342 = vmatprep.subr.bf16.mxu0 0
    %343 = vmatpush1.bf16.msra.mxu0 0
    %344 = vmatprep.subr.bf16.mxu0 0
    %345 = vmatpush1.bf16.msra.mxu0 0
    %346 = vmatprep.subr.bf16.mxu0 0
    %347 = vmatpush1.bf16.msra.mxu0 0
    %348 = vmatprep.subr.bf16.mxu0 0
    %349 = vmatpush1.bf16.msra.mxu0 0
    %350 = vmatprep.subr.bf16.mxu0 0
    %351 = vmatpush1.bf16.msra.mxu0 0
    %352 = vmatprep.subr.bf16.mxu0 0
    %353 = vmatpush1.bf16.msra.mxu0 0
    %354 = vmatprep.subr.bf16.mxu0 0
    %355 = vmatpush1.bf16.msra.mxu0 0
    %356 = vmatprep.subr.bf16.mxu0 0
    %357 = vmatpush1.bf16.msra.mxu0 0
    %358 = vmatprep.mubr.bf16.mxu0 0
    %359 = vmatmul.mubr.bf16.gmra.mrb[0].mxu0 %v258
    %v360 = vpop.f32.mrb[0].mxu0
    %v361 = vadd.f32 %v312, %v360
    %v362 = vpop.f32.mrb[0].mxu0
    %v363 = vpop.f32.mrb[0].mxu0
    %v364 = vadd.f32 %v312, %v363
    %v365 = vpop.f32.mrb[0].mxu0
    %366 = vdwg.mxu0
    %v367 = vld [vmem:[#allocation10] sm:$0xf]
    %v368 = vld [vmem:[#allocation10 + $0x4] sm:$0xf]
    %v369 = vld [vmem:[#allocation10 + $0x8] sm:$0xf]
    %v370 = vld [vmem:[#allocation10 + $0xc] sm:$0xf]
    %v371 = vld [vmem:[#allocation11] sm:$0x1]
    %v373 = vlaneseq
    %v374 = vshrl.u32 %v373, 7
    %v375 = vsub.s32 0, %v374
    %v376 = vrot.slane %v371, %v375
    %v382 = vunpack.c.l.b16 %v367
    %v383 = vunpack.c.l.b16 %v368
    %v384 = vunpack.c.l.b16 %v369
    %v385 = vunpack.c.l.b16 %v370
    %v386 = vpack.c.b16 %v383, %v382
    %v387 = vpack.c.b16 %v385, %v384
    %390 = vmatprep.subr.bf16.mxu0 0
    %391 = vmatpush1.bf16.msra.mxu0 %v386
    %392 = vmatprep.subr.bf16.mxu0 0
    %393 = vmatpush1.bf16.msra.mxu0 %v387
    %394 = vmatprep.subr.bf16.mxu0 0
    %395 = vmatpush1.bf16.msra.mxu0 0
    %396 = vmatprep.subr.bf16.mxu0 0
    %397 = vmatpush1.bf16.msra.mxu0 0
    %398 = vmatprep.subr.bf16.mxu0 0
    %399 = vmatpush1.bf16.msra.mxu0 0
    %400 = vmatprep.subr.bf16.mxu0 0
    %401 = vmatpush1.bf16.msra.mxu0 0
    %402 = vmatprep.subr.bf16.mxu0 0
    %403 = vmatpush1.bf16.msra.mxu0 0
    %404 = vmatprep.subr.bf16.mxu0 0
    %405 = vmatpush1.bf16.msra.mxu0 0
    %406 = vmatprep.subr.bf16.mxu0 0
    %407 = vmatpush1.bf16.msra.mxu0 0
    %408 = vmatprep.subr.bf16.mxu0 0
    %409 = vmatpush1.bf16.msra.mxu0 0
    %410 = vmatprep.subr.bf16.mxu0 0
    %411 = vmatpush1.bf16.msra.mxu0 0
    %412 = vmatprep.subr.bf16.mxu0 0
    %413 = vmatpush1.bf16.msra.mxu0 0
    %414 = vmatprep.subr.bf16.mxu0 0
    %415 = vmatpush1.bf16.msra.mxu0 0
    %416 = vmatprep.subr.bf16.mxu0 0
    %417 = vmatpush1.bf16.msra.mxu0 0
    %418 = vmatprep.subr.bf16.mxu0 0
    %419 = vmatpush1.bf16.msra.mxu0 0
    %420 = vmatprep.subr.bf16.mxu0 0
    %421 = vmatpush1.bf16.msra.mxu0 0
    %422 = vmatprep.mubr.bf16.mxu0 0
    %423 = vmatmul.mubr.bf16.gmra.mrb[0].mxu0 %v258
    %v424 = vpop.f32.mrb[0].mxu0
    %v425 = vadd.f32 %v376, %v424
    %v426 = vpop.f32.mrb[0].mxu0
    %v427 = vpop.f32.mrb[0].mxu0
    %v428 = vadd.f32 %v376, %v427
    %v429 = vpop.f32.mrb[0].mxu0
    %430 = vdwg.mxu0
    %v431 = vpack.c.bf16 %v302, %v301
    %v432 = vpack.c.bf16 %v364, %v361
    %v433 = vpack.c.bf16 %v428, %v425
    %v434 = vld [vmem:[#allocation13] sm:$0x1]
    %vm435 = vcmask 64512
    %v437 = vsel %vm435, %v431, 0
    %v440 = vsel %vm435, %v432, 0
    %442 = vmatprep.subr.bf16.mxu0 0
    %443 = vmatpush1.bf16.xpose.msra.mxu0 %v440
    %444 = vmatprep.subr.bf16.mxu0 0
    %445 = vmatpush1.bf16.xpose.msra.mxu0 0
    %446 = vmatprep.subr.bf16.mxu0 0
    %447 = vmatpush1.bf16.xpose.msra.mxu0 0
    %448 = vmatprep.subr.bf16.mxu0 0
    %449 = vmatpush1.bf16.xpose.msra.mxu0 0
    %450 = vmatprep.subr.bf16.mxu0 0
    %451 = vmatpush1.bf16.xpose.msra.mxu0 0
    %452 = vmatprep.subr.bf16.mxu0 0
    %453 = vmatpush1.bf16.xpose.msra.mxu0 0
    %454 = vmatprep.subr.bf16.mxu0 0
    %455 = vmatpush1.bf16.xpose.msra.mxu0 0
    %456 = vmatprep.subr.bf16.mxu0 0
    %457 = vmatpush1.bf16.xpose.msra.mxu0 0
    %458 = vmatprep.subr.bf16.mxu0 0
    %459 = vmatpush1.bf16.xpose.msra.mxu0 0
    %460 = vmatprep.subr.bf16.mxu0 0
    %461 = vmatpush1.bf16.xpose.msra.mxu0 0
    %462 = vmatprep.subr.bf16.mxu0 0
    %463 = vmatpush1.bf16.xpose.msra.mxu0 0
    %464 = vmatprep.subr.bf16.mxu0 0
    %465 = vmatpush1.bf16.xpose.msra.mxu0 0
    %466 = vmatprep.subr.bf16.mxu0 0
    %467 = vmatpush1.bf16.xpose.msra.mxu0 0
    %468 = vmatprep.subr.bf16.mxu0 0
    %469 = vmatpush1.bf16.xpose.msra.mxu0 0
    %470 = vmatprep.subr.bf16.mxu0 0
    %471 = vmatpush1.bf16.xpose.msra.mxu0 0
    %472 = vmatprep.subr.bf16.mxu0 0
    %473 = vmatpush1.bf16.xpose.msra.mxu0 0
    %474 = vmatprep.mubr.bf16.mxu0 0
    %475 = vmatmul.mubr.bf16.gmra.mrb[0].mxu0 %v437
    %v476 = vpop.f32.mrb[0].mxu0
    %v477 = vadd.f32 %v171, %v476
    %v478 = vpop.f32.mrb[0].mxu0
    %v479 = vpop.f32.mrb[0].mxu0
    %v480 = vadd.f32 %v172, %v479
    %v481 = vpop.f32.mrb[0].mxu0
    %482 = vdwg.mxu0
    %vm483 = vcmask 130048
    %v484 = vsel %vm483, %v477, -inf
    %485 = vmax.xlane.f32.xlu0 %v484
    %v486 = vpop.xlane.xlu0 %485
    %v487 = vsel %vm483, %v480, -inf
    %488 = vmax.xlane.f32.xlu0 %v487
    %v489 = vpop.xlane.xlu0 %488
    %v490 = vsub.f32 %v477, %v486
    %v491 = vsub.f32 %v480, %v489
    %v492 = vmul.f32 %v490, 1.442695
    %v493 = vpow.pop %v492
    %v494 = vmul.f32 %v491, 1.442695
    %v495 = vpow.pop %v494
    %v496 = vsel %vm483, %v493, 0.0
    %497 = vadd.xlane.f32.xlu0 %v496
    %v498 = vpop.xlane.xlu0 %497
    %v499 = vsel %vm483, %v495, 0.0
    %500 = vadd.xlane.f32.xlu0 %v499
    %v501 = vpop.xlane.xlu0 %500
    %v502 = vrcp.pop %v498
    %v503 = vrcp.pop %v501
    %v504 = vmul.f32 %v493, %v502
    %v505 = vmul.f32 %v495, %v503
    %v506 = vpack.c.bf16 %v505, %v504
    %v508 = vsel %vm483, %v506, 0
    %510 = vmatprep.subr.bf16.mxu0 0
    %511 = vmatpush1.bf16.msra.mxu0 %v433
    %512 = vmatprep.subr.bf16.mxu0 0
    %513 = vmatpush1.bf16.msra.mxu0 0
    %514 = vmatprep.subr.bf16.mxu0 0
    %515 = vmatpush1.bf16.msra.mxu0 0
    %516 = vmatprep.subr.bf16.mxu0 0
    %517 = vmatpush1.bf16.msra.mxu0 0
    %518 = vmatprep.subr.bf16.mxu0 0
    %519 = vmatpush1.bf16.msra.mxu0 0
    %520 = vmatprep.subr.bf16.mxu0 0
    %521 = vmatpush1.bf16.msra.mxu0 0
    %522 = vmatprep.subr.bf16.mxu0 0
    %523 = vmatpush1.bf16.msra.mxu0 0
    %524 = vmatprep.subr.bf16.mxu0 0
    %525 = vmatpush1.bf16.msra.mxu0 0
    %526 = vmatprep.subr.bf16.mxu0 0
    %527 = vmatpush1.bf16.msra.mxu0 0
    %528 = vmatprep.subr.bf16.mxu0 0
    %529 = vmatpush1.bf16.msra.mxu0 0
    %530 = vmatprep.subr.bf16.mxu0 0
    %531 = vmatpush1.bf16.msra.mxu0 0
    %532 = vmatprep.subr.bf16.mxu0 0
    %533 = vmatpush1.bf16.msra.mxu0 0
    %534 = vmatprep.subr.bf16.mxu0 0
    %535 = vmatpush1.bf16.msra.mxu0 0
    %536 = vmatprep.subr.bf16.mxu0 0
    %537 = vmatpush1.bf16.msra.mxu0 0
    %538 = vmatprep.subr.bf16.mxu0 0
    %539 = vmatpush1.bf16.msra.mxu0 0
    %540 = vmatprep.subr.bf16.mxu0 0
    %541 = vmatpush1.bf16.msra.mxu0 0
    %542 = vmatprep.mubr.bf16.mxu0 0
    %543 = vmatmul.mubr.bf16.gmra.mrb[0].mxu0 %v508
    %v544 = vpop.f32.mrb[0].mxu0
    %v545 = vadd.f32 0.0, %v544
    %v546 = vpop.f32.mrb[0].mxu0
    %v547 = vpop.f32.mrb[0].mxu0
    %v548 = vadd.f32 0.0, %v547
    %v549 = vpop.f32.mrb[0].mxu0
    %550 = vdwg.mxu0
    %v551 = vpack.c.bf16 %v548, %v545
    %v552 = vld [vmem:[%s10] sm:$0xf]
    %v554 = vsel %vm435, %v551, 0
    %vm556 = vcmask 1043456
    %v558 = vsel %vm556, %v552, 0
    %560 = vmatprep.subr.bf16.mxu0 0
    %561 = vmatpush1.bf16.msra.mxu0 %v558
    %562 = vmatprep.subr.bf16.mxu0 0
    %563 = vmatpush1.bf16.msra.mxu0 0
    %564 = vmatprep.subr.bf16.mxu0 0
    %565 = vmatpush1.bf16.msra.mxu0 0
    %566 = vmatprep.subr.bf16.mxu0 0
    %567 = vmatpush1.bf16.msra.mxu0 0
    %568 = vmatprep.subr.bf16.mxu0 0
    %569 = vmatpush1.bf16.msra.mxu0 0
    %570 = vmatprep.subr.bf16.mxu0 0
    %571 = vmatpush1.bf16.msra.mxu0 0
    %572 = vmatprep.subr.bf16.mxu0 0
    %573 = vmatpush1.bf16.msra.mxu0 0
    %574 = vmatprep.subr.bf16.mxu0 0
    %575 = vmatpush1.bf16.msra.mxu0 0
    %576 = vmatprep.subr.bf16.mxu0 0
    %577 = vmatpush1.bf16.msra.mxu0 0
    %578 = vmatprep.subr.bf16.mxu0 0
    %579 = vmatpush1.bf16.msra.mxu0 0
    %580 = vmatprep.subr.bf16.mxu0 0
    %581 = vmatpush1.bf16.msra.mxu0 0
    %582 = vmatprep.subr.bf16.mxu0 0
    %583 = vmatpush1.bf16.msra.mxu0 0
    %584 = vmatprep.subr.bf16.mxu0 0
    %585 = vmatpush1.bf16.msra.mxu0 0
    %586 = vmatprep.subr.bf16.mxu0 0
    %587 = vmatpush1.bf16.msra.mxu0 0
    %588 = vmatprep.subr.bf16.mxu0 0
    %589 = vmatpush1.bf16.msra.mxu0 0
    %590 = vmatprep.subr.bf16.mxu0 0
    %591 = vmatpush1.bf16.msra.mxu0 0
    %592 = vmatprep.mubr.bf16.mxu0 0
    %593 = vmatmul.mubr.bf16.gmra.mrb[0].mxu0 %v554
    %v594 = vpop.f32.mrb[0].mxu0
    %v595 = vadd.f32 0.0, %v594
    %v596 = vpop.f32.mrb[0].mxu0
    %v597 = vpop.f32.mrb[0].mxu0
    %v598 = vadd.f32 0.0, %v597
    %v599 = vpop.f32.mrb[0].mxu0
    %600 = vdwg.mxu0
    %v602 = vlaneseq
    %v603 = vshrl.u32 %v602, 7
    %v604 = vsub.s32 0, %v603
    %v605 = vrot.slane %v434, %v604
    %v607 = vadd.f32 %v605, %v595
    %v608 = vadd.f32 %v605, %v598
    %610 = vrot.lane.b32.xlu0 %v431, 120
    %v611 = vpop.permute.xlu0 %610
    %613 = vrot.lane.b32.xlu0 %v432, 120
    %v614 = vpop.permute.xlu0 %613
    %v616 = vsel %vm435, %v611, 0
    %v619 = vsel %vm435, %v614, 0
    %621 = vmatprep.subr.bf16.mxu0 0
    %622 = vmatpush1.bf16.xpose.msra.mxu0 %v619
    %623 = vmatprep.subr.bf16.mxu0 0
    %624 = vmatpush1.bf16.xpose.msra.mxu0 0
    %625 = vmatprep.subr.bf16.mxu0 0
    %626 = vmatpush1.bf16.xpose.msra.mxu0 0
    %627 = vmatprep.subr.bf16.mxu0 0
    %628 = vmatpush1.bf16.xpose.msra.mxu0 0
    %629 = vmatprep.subr.bf16.mxu0 0
    %630 = vmatpush1.bf16.xpose.msra.mxu0 0
    %631 = vmatprep.subr.bf16.mxu0 0
    %632 = vmatpush1.bf16.xpose.msra.mxu0 0
    %633 = vmatprep.subr.bf16.mxu0 0
    %634 = vmatpush1.bf16.xpose.msra.mxu0 0
    %635 = vmatprep.subr.bf16.mxu0 0
    %636 = vmatpush1.bf16.xpose.msra.mxu0 0
    %637 = vmatprep.subr.bf16.mxu0 0
    %638 = vmatpush1.bf16.xpose.msra.mxu0 0
    %639 = vmatprep.subr.bf16.mxu0 0
    %640 = vmatpush1.bf16.xpose.msra.mxu0 0
    %641 = vmatprep.subr.bf16.mxu0 0
    %642 = vmatpush1.bf16.xpose.msra.mxu0 0
    %643 = vmatprep.subr.bf16.mxu0 0
    %644 = vmatpush1.bf16.xpose.msra.mxu0 0
    %645 = vmatprep.subr.bf16.mxu0 0
    %646 = vmatpush1.bf16.xpose.msra.mxu0 0
    %647 = vmatprep.subr.bf16.mxu0 0
    %648 = vmatpush1.bf16.xpose.msra.mxu0 0
    %649 = vmatprep.subr.bf16.mxu0 0
    %650 = vmatpush1.bf16.xpose.msra.mxu0 0
    %651 = vmatprep.subr.bf16.mxu0 0
    %652 = vmatpush1.bf16.xpose.msra.mxu0 0
    %653 = vmatprep.mubr.bf16.mxu0 0
    %654 = vmatmul.mubr.bf16.gmra.mrb[0].mxu0 %v616
    %v655 = vpop.f32.mrb[0].mxu0
    %v656 = vadd.f32 %v171, %v655
    %v657 = vpop.f32.mrb[0].mxu0
    %v658 = vpop.f32.mrb[0].mxu0
    %v659 = vadd.f32 %v172, %v658
    %v660 = vpop.f32.mrb[0].mxu0
    %661 = vdwg.mxu0
    %v662 = vsel %vm483, %v656, -inf
    %663 = vmax.xlane.f32.xlu0 %v662
    %v664 = vpop.xlane.xlu0 %663
    %v665 = vsel %vm483, %v659, -inf
    %666 = vmax.xlane.f32.xlu0 %v665
    %v667 = vpop.xlane.xlu0 %666
    %v668 = vsub.f32 %v656, %v664
    %v669 = vsub.f32 %v659, %v667
    %v670 = vmul.f32 %v668, 1.442695
    %v671 = vpow.pop %v670
    %v672 = vmul.f32 %v669, 1.442695
    %v673 = vpow.pop %v672
    %v674 = vsel %vm483, %v671, 0.0
    %675 = vadd.xlane.f32.xlu0 %v674
    %v676 = vpop.xlane.xlu0 %675
    %v677 = vsel %vm483, %v673, 0.0
    %678 = vadd.xlane.f32.xlu0 %v677
    %v679 = vpop.xlane.xlu0 %678
    %v680 = vrcp.pop %v676
    %v681 = vrcp.pop %v679
    %v682 = vmul.f32 %v671, %v680
    %v683 = vmul.f32 %v673, %v681
    %v684 = vpack.c.bf16 %v683, %v682
    %686 = vrot.lane.b32.xlu0 %v433, 120
    %v687 = vpop.permute.xlu0 %686
    %v690 = vsel %vm483, %v684, 0
    %692 = vmatprep.subr.bf16.mxu0 0
    %693 = vmatpush1.bf16.msra.mxu0 %v687
    %694 = vmatprep.subr.bf16.mxu0 0
    %695 = vmatpush1.bf16.msra.mxu0 0
    %696 = vmatprep.subr.bf16.mxu0 0
    %697 = vmatpush1.bf16.msra.mxu0 0
    %698 = vmatprep.subr.bf16.mxu0 0
    %699 = vmatpush1.bf16.msra.mxu0 0
    %700 = vmatprep.subr.bf16.mxu0 0
    %701 = vmatpush1.bf16.msra.mxu0 0
    %702 = vmatprep.subr.bf16.mxu0 0
    %703 = vmatpush1.bf16.msra.mxu0 0
    %704 = vmatprep.subr.bf16.mxu0 0
    %705 = vmatpush1.bf16.msra.mxu0 0
    %706 = vmatprep.subr.bf16.mxu0 0
    %707 = vmatpush1.bf16.msra.mxu0 0
    %708 = vmatprep.subr.bf16.mxu0 0
    %709 = vmatpush1.bf16.msra.mxu0 0
    %710 = vmatprep.subr.bf16.mxu0 0
    %711 = vmatpush1.bf16.msra.mxu0 0
    %712 = vmatprep.subr.bf16.mxu0 0
    %713 = vmatpush1.bf16.msra.mxu0 0
    %714 = vmatprep.subr.bf16.mxu0 0
    %715 = vmatpush1.bf16.msra.mxu0 0
    %716 = vmatprep.subr.bf16.mxu0 0
    %717 = vmatpush1.bf16.msra.mxu0 0
    %718 = vmatprep.subr.bf16.mxu0 0
    %719 = vmatpush1.bf16.msra.mxu0 0
    %720 = vmatprep.subr.bf16.mxu0 0
    %721 = vmatpush1.bf16.msra.mxu0 0
    %722 = vmatprep.subr.bf16.mxu0 0
    %723 = vmatpush1.bf16.msra.mxu0 0
    %724 = vmatprep.mubr.bf16.mxu0 0
    %725 = vmatmul.mubr.bf16.gmra.mrb[0].mxu0 %v690
    %v726 = vpop.f32.mrb[0].mxu0
    %v727 = vadd.f32 0.0, %v726
    %v728 = vpop.f32.mrb[0].mxu0
    %v729 = vpop.f32.mrb[0].mxu0
    %v730 = vadd.f32 0.0, %v729
    %v731 = vpop.f32.mrb[0].mxu0
    %732 = vdwg.mxu0
    %v733 = vpack.c.bf16 %v730, %v727
    %v734 = vld [vmem:[%s10 + $0x4] sm:$0xf]
    %v736 = vsel %vm435, %v733, 0
    %v739 = vsel %vm556, %v734, 0
    %741 = vmatprep.subr.bf16.mxu0 0
    %742 = vmatpush1.bf16.msra.mxu0 %v739
    %743 = vmatprep.subr.bf16.mxu0 0
    %744 = vmatpush1.bf16.msra.mxu0 0
    %745 = vmatprep.subr.bf16.mxu0 0
    %746 = vmatpush1.bf16.msra.mxu0 0
    %747 = vmatprep.subr.bf16.mxu0 0
    %748 = vmatpush1.bf16.msra.mxu0 0
    %749 = vmatprep.subr.bf16.mxu0 0
    %750 = vmatpush1.bf16.msra.mxu0 0
    %751 = vmatprep.subr.bf16.mxu0 0
    %752 = vmatpush1.bf16.msra.mxu0 0
    %753 = vmatprep.subr.bf16.mxu0 0
    %754 = vmatpush1.bf16.msra.mxu0 0
    %755 = vmatprep.subr.bf16.mxu0 0
    %756 = vmatpush1.bf16.msra.mxu0 0
    %757 = vmatprep.subr.bf16.mxu0 0
    %758 = vmatpush1.bf16.msra.mxu0 0
    %759 = vmatprep.subr.bf16.mxu0 0
    %760 = vmatpush1.bf16.msra.mxu0 0
    %761 = vmatprep.subr.bf16.mxu0 0
    %762 = vmatpush1.bf16.msra.mxu0 0
    %763 = vmatprep.subr.bf16.mxu0 0
    %764 = vmatpush1.bf16.msra.mxu0 0
    %765 = vmatprep.subr.bf16.mxu0 0
    %766 = vmatpush1.bf16.msra.mxu0 0
    %767 = vmatprep.subr.bf16.mxu0 0
    %768 = vmatpush1.bf16.msra.mxu0 0
    %769 = vmatprep.subr.bf16.mxu0 0
    %770 = vmatpush1.bf16.msra.mxu0 0
    %771 = vmatprep.subr.bf16.mxu0 0
    %772 = vmatpush1.bf16.msra.mxu0 0
    %773 = vmatprep.mubr.bf16.mxu0 0
    %774 = vmatmul.mubr.bf16.gmra.mrb[0].mxu0 %v736
    %v775 = vpop.f32.mrb[0].mxu0
    %v776 = vadd.f32 0.0, %v775
    %v777 = vpop.f32.mrb[0].mxu0
    %v778 = vpop.f32.mrb[0].mxu0
    %v779 = vadd.f32 0.0, %v778
    %v780 = vpop.f32.mrb[0].mxu0
    %781 = vdwg.mxu0
    %v782 = vadd.f32 %v607, %v776
    %v783 = vadd.f32 %v608, %v779
    %784 = vrot.lane.b32.xlu0 %v431, 112
    %v785 = vpop.permute.xlu0 %784
    %786 = vrot.lane.b32.xlu0 %v432, 112
    %v787 = vpop.permute.xlu0 %786
    %v789 = vsel %vm435, %v785, 0
    %v792 = vsel %vm435, %v787, 0
    %794 = vmatprep.subr.bf16.mxu0 0
    %795 = vmatpush1.bf16.xpose.msra.mxu0 %v792
    %796 = vmatprep.subr.bf16.mxu0 0
    %797 = vmatpush1.bf16.xpose.msra.mxu0 0
    %798 = vmatprep.subr.bf16.mxu0 0
    %799 = vmatpush1.bf16.xpose.msra.mxu0 0
    %800 = vmatprep.subr.bf16.mxu0 0
    %801 = vmatpush1.bf16.xpose.msra.mxu0 0
    %802 = vmatprep.subr.bf16.mxu0 0
    %803 = vmatpush1.bf16.xpose.msra.mxu0 0
    %804 = vmatprep.subr.bf16.mxu0 0
    %805 = vmatpush1.bf16.xpose.msra.mxu0 0
    %806 = vmatprep.subr.bf16.mxu0 0
    %807 = vmatpush1.bf16.xpose.msra.mxu0 0
    %808 = vmatprep.subr.bf16.mxu0 0
    %809 = vmatpush1.bf16.xpose.msra.mxu0 0
    %810 = vmatprep.subr.bf16.mxu0 0
    %811 = vmatpush1.bf16.xpose.msra.mxu0 0
    %812 = vmatprep.subr.bf16.mxu0 0
    %813 = vmatpush1.bf16.xpose.msra.mxu0 0
    %814 = vmatprep.subr.bf16.mxu0 0
    %815 = vmatpush1.bf16.xpose.msra.mxu0 0
    %816 = vmatprep.subr.bf16.mxu0 0
    %817 = vmatpush1.bf16.xpose.msra.mxu0 0
    %818 = vmatprep.subr.bf16.mxu0 0
    %819 = vmatpush1.bf16.xpose.msra.mxu0 0
    %820 = vmatprep.subr.bf16.mxu0 0
    %821 = vmatpush1.bf16.xpose.msra.mxu0 0
    %822 = vmatprep.subr.bf16.mxu0 0
    %823 = vmatpush1.bf16.xpose.msra.mxu0 0
    %824 = vmatprep.subr.bf16.mxu0 0
    %825 = vmatpush1.bf16.xpose.msra.mxu0 0
    %826 = vmatprep.mubr.bf16.mxu0 0
    %827 = vmatmul.mubr.bf16.gmra.mrb[0].mxu0 %v789
    %v828 = vpop.f32.mrb[0].mxu0
    %v829 = vadd.f32 %v171, %v828
    %v830 = vpop.f32.mrb[0].mxu0
    %v831 = vpop.f32.mrb[0].mxu0
    %v832 = vadd.f32 %v172, %v831
    %v833 = vpop.f32.mrb[0].mxu0
    %834 = vdwg.mxu0
    %v835 = vsel %vm483, %v829, -inf
    %836 = vmax.xlane.f32.xlu0 %v835
    %v837 = vpop.xlane.xlu0 %836
    %v838 = vsel %vm483, %v832, -inf
    %839 = vmax.xlane.f32.xlu0 %v838
    %v840 = vpop.xlane.xlu0 %839
    %v841 = vsub.f32 %v829, %v837
    %v842 = vsub.f32 %v832, %v840
    %v843 = vmul.f32 %v841, 1.442695
    %v844 = vpow.pop %v843
    %v845 = vmul.f32 %v842, 1.442695
    %v846 = vpow.pop %v845
    %v847 = vsel %vm483, %v844, 0.0
    %848 = vadd.xlane.f32.xlu0 %v847
    %v849 = vpop.xlane.xlu0 %848
    %v850 = vsel %vm483, %v846, 0.0
    %851 = vadd.xlane.f32.xlu0 %v850
    %v852 = vpop.xlane.xlu0 %851
    %v853 = vrcp.pop %v849
    %v854 = vrcp.pop %v852
    %v855 = vmul.f32 %v844, %v853
    %v856 = vmul.f32 %v846, %v854
    %v857 = vpack.c.bf16 %v856, %v855
    %858 = vrot.lane.b32.xlu0 %v433, 112
    %v859 = vpop.permute.xlu0 %858
    %v862 = vsel %vm483, %v857, 0
    %864 = vmatprep.subr.bf16.mxu0 0
    %865 = vmatpush1.bf16.msra.mxu0 %v859
    %866 = vmatprep.subr.bf16.mxu0 0
    %867 = vmatpush1.bf16.msra.mxu0 0
    %868 = vmatprep.subr.bf16.mxu0 0
    %869 = vmatpush1.bf16.msra.mxu0 0
    %870 = vmatprep.subr.bf16.mxu0 0
    %871 = vmatpush1.bf16.msra.mxu0 0
    %872 = vmatprep.subr.bf16.mxu0 0
    %873 = vmatpush1.bf16.msra.mxu0 0
    %874 = vmatprep.subr.bf16.mxu0 0
    %875 = vmatpush1.bf16.msra.mxu0 0
    %876 = vmatprep.subr.bf16.mxu0 0
    %877 = vmatpush1.bf16.msra.mxu0 0
    %878 = vmatprep.subr.bf16.mxu0 0
    %879 = vmatpush1.bf16.msra.mxu0 0
    %880 = vmatprep.subr.bf16.mxu0 0
    %881 = vmatpush1.bf16.msra.mxu0 0
    %882 = vmatprep.subr.bf16.mxu0 0
    %883 = vmatpush1.bf16.msra.mxu0 0
    %884 = vmatprep.subr.bf16.mxu0 0
    %885 = vmatpush1.bf16.msra.mxu0 0
    %886 = vmatprep.subr.bf16.mxu0 0
    %887 = vmatpush1.bf16.msra.mxu0 0
    %888 = vmatprep.subr.bf16.mxu0 0
    %889 = vmatpush1.bf16.msra.mxu0 0
    %890 = vmatprep.subr.bf16.mxu0 0
    %891 = vmatpush1.bf16.msra.mxu0 0
    %892 = vmatprep.subr.bf16.mxu0 0
    %893 = vmatpush1.bf16.msra.mxu0 0
    %894 = vmatprep.subr.bf16.mxu0 0
    %895 = vmatpush1.bf16.msra.mxu0 0
    %896 = vmatprep.mubr.bf16.mxu0 0
    %897 = vmatmul.mubr.bf16.gmra.mrb[0].mxu0 %v862
    %v898 = vpop.f32.mrb[0].mxu0
    %v899 = vadd.f32 0.0, %v898
    %v900 = vpop.f32.mrb[0].mxu0
    %v901 = vpop.f32.mrb[0].mxu0
    %v902 = vadd.f32 0.0, %v901
    %v903 = vpop.f32.mrb[0].mxu0
    %904 = vdwg.mxu0
    %v905 = vpack.c.bf16 %v902, %v899
    %v906 = vld [vmem:[%s10 + $0x8] sm:$0xf]
    %v908 = vsel %vm435, %v905, 0
    %v911 = vsel %vm556, %v906, 0
    %913 = vmatprep.subr.bf16.mxu0 0
    %914 = vmatpush1.bf16.msra.mxu0 %v911
    %915 = vmatprep.subr.bf16.mxu0 0
    %916 = vmatpush1.bf16.msra.mxu0 0
    %917 = vmatprep.subr.bf16.mxu0 0
    %918 = vmatpush1.bf16.msra.mxu0 0
    %919 = vmatprep.subr.bf16.mxu0 0
    %920 = vmatpush1.bf16.msra.mxu0 0
    %921 = vmatprep.subr.bf16.mxu0 0
    %922 = vmatpush1.bf16.msra.mxu0 0
    %923 = vmatprep.subr.bf16.mxu0 0
    %924 = vmatpush1.bf16.msra.mxu0 0
    %925 = vmatprep.subr.bf16.mxu0 0
    %926 = vmatpush1.bf16.msra.mxu0 0
    %927 = vmatprep.subr.bf16.mxu0 0
    %928 = vmatpush1.bf16.msra.mxu0 0
    %929 = vmatprep.subr.bf16.mxu0 0
    %930 = vmatpush1.bf16.msra.mxu0 0
    %931 = vmatprep.subr.bf16.mxu0 0
    %932 = vmatpush1.bf16.msra.mxu0 0
    %933 = vmatprep.subr.bf16.mxu0 0
    %934 = vmatpush1.bf16.msra.mxu0 0
    %935 = vmatprep.subr.bf16.mxu0 0
    %936 = vmatpush1.bf16.msra.mxu0 0
    %937 = vmatprep.subr.bf16.mxu0 0
    %938 = vmatpush1.bf16.msra.mxu0 0
    %939 = vmatprep.subr.bf16.mxu0 0
    %940 = vmatpush1.bf16.msra.mxu0 0
    %941 = vmatprep.subr.bf16.mxu0 0
    %942 = vmatpush1.bf16.msra.mxu0 0
    %943 = vmatprep.subr.bf16.mxu0 0
    %944 = vmatpush1.bf16.msra.mxu0 0
    %945 = vmatprep.mubr.bf16.mxu0 0
    %946 = vmatmul.mubr.bf16.gmra.mrb[0].mxu0 %v908
    %v947 = vpop.f32.mrb[0].mxu0
    %v948 = vadd.f32 0.0, %v947
    %v949 = vpop.f32.mrb[0].mxu0
    %v950 = vpop.f32.mrb[0].mxu0
    %v951 = vadd.f32 0.0, %v950
    %v952 = vpop.f32.mrb[0].mxu0
    %953 = vdwg.mxu0
    %v954 = vadd.f32 %v782, %v948
    %v955 = vadd.f32 %v783, %v951
    %956 = vrot.lane.b32.xlu0 %v431, 104
    %v957 = vpop.permute.xlu0 %956
    %958 = vrot.lane.b32.xlu0 %v432, 104
    %v959 = vpop.permute.xlu0 %958
    %v961 = vsel %vm435, %v957, 0
    %v964 = vsel %vm435, %v959, 0
    %966 = vmatprep.subr.bf16.mxu0 0
    %967 = vmatpush1.bf16.xpose.msra.mxu0 %v964
    %968 = vmatprep.subr.bf16.mxu0 0
    %969 = vmatpush1.bf16.xpose.msra.mxu0 0
    %970 = vmatprep.subr.bf16.mxu0 0
    %971 = vmatpush1.bf16.xpose.msra.mxu0 0
    %972 = vmatprep.subr.bf16.mxu0 0
    %973 = vmatpush1.bf16.xpose.msra.mxu0 0
    %974 = vmatprep.subr.bf16.mxu0 0
    %975 = vmatpush1.bf16.xpose.msra.mxu0 0
    %976 = vmatprep.subr.bf16.mxu0 0
    %977 = vmatpush1.bf16.xpose.msra.mxu0 0
    %978 = vmatprep.subr.bf16.mxu0 0
    %979 = vmatpush1.bf16.xpose.msra.mxu0 0
    %980 = vmatprep.subr.bf16.mxu0 0
    %981 = vmatpush1.bf16.xpose.msra.mxu0 0
    %982 = vmatprep.subr.bf16.mxu0 0
    %983 = vmatpush1.bf16.xpose.msra.mxu0 0
    %984 = vmatprep.subr.bf16.mxu0 0
    %985 = vmatpush1.bf16.xpose.msra.mxu0 0
    %986 = vmatprep.subr.bf16.mxu0 0
    %987 = vmatpush1.bf16.xpose.msra.mxu0 0
    %988 = vmatprep.subr.bf16.mxu0 0
    %989 = vmatpush1.bf16.xpose.msra.mxu0 0
    %990 = vmatprep.subr.bf16.mxu0 0
    %991 = vmatpush1.bf16.xpose.msra.mxu0 0
    %992 = vmatprep.subr.bf16.mxu0 0
    %993 = vmatpush1.bf16.xpose.msra.mxu0 0
    %994 = vmatprep.subr.bf16.mxu0 0
    %995 = vmatpush1.bf16.xpose.msra.mxu0 0
    %996 = vmatprep.subr.bf16.mxu0 0
    %997 = vmatpush1.bf16.xpose.msra.mxu0 0
    %998 = vmatprep.mubr.bf16.mxu0 0
    %999 = vmatmul.mubr.bf16.gmra.mrb[0].mxu0 %v961
    %v1000 = vpop.f32.mrb[0].mxu0
    %v1001 = vadd.f32 %v171, %v1000
    %v1002 = vpop.f32.mrb[0].mxu0
    %v1003 = vpop.f32.mrb[0].mxu0
    %v1004 = vadd.f32 %v172, %v1003
    %v1005 = vpop.f32.mrb[0].mxu0
    %1006 = vdwg.mxu0
    %v1007 = vsel %vm483, %v1001, -inf
    %1008 = vmax.xlane.f32.xlu0 %v1007
    %v1009 = vpop.xlane.xlu0 %1008
    %v1010 = vsel %vm483, %v1004, -inf
    %1011 = vmax.xlane.f32.xlu0 %v1010
    %v1012 = vpop.xlane.xlu0 %1011
    %v1013 = vsub.f32 %v1001, %v1009
    %v1014 = vsub.f32 %v1004, %v1012
    %v1015 = vmul.f32 %v1013, 1.442695
    %v1016 = vpow.pop %v1015
    %v1017 = vmul.f32 %v1014, 1.442695
    %v1018 = vpow.pop %v1017
    %v1019 = vsel %vm483, %v1016, 0.0
    %1020 = vadd.xlane.f32.xlu0 %v1019
    %v1021 = vpop.xlane.xlu0 %1020
    %v1022 = vsel %vm483, %v1018, 0.0
    %1023 = vadd.xlane.f32.xlu0 %v1022
    %v1024 = vpop.xlane.xlu0 %1023
    %v1025 = vrcp.pop %v1021
    %v1026 = vrcp.pop %v1024
    %v1027 = vmul.f32 %v1016, %v1025
    %v1028 = vmul.f32 %v1018, %v1026
    %v1029 = vpack.c.bf16 %v1028, %v1027
    %1030 = vrot.lane.b32.xlu0 %v433, 104
    %v1031 = vpop.permute.xlu0 %1030
    %v1034 = vsel %vm483, %v1029, 0
    %1036 = vmatprep.subr.bf16.mxu0 0
    %1037 = vmatpush1.bf16.msra.mxu0 %v1031
    %1038 = vmatprep.subr.bf16.mxu0 0
    %1039 = vmatpush1.bf16.msra.mxu0 0
    %1040 = vmatprep.subr.bf16.mxu0 0
    %1041 = vmatpush1.bf16.msra.mxu0 0
    %1042 = vmatprep.subr.bf16.mxu0 0
    %1043 = vmatpush1.bf16.msra.mxu0 0
    %1044 = vmatprep.subr.bf16.mxu0 0
    %1045 = vmatpush1.bf16.msra.mxu0 0
    %1046 = vmatprep.subr.bf16.mxu0 0
    %1047 = vmatpush1.bf16.msra.mxu0 0
    %1048 = vmatprep.subr.bf16.mxu0 0
    %1049 = vmatpush1.bf16.msra.mxu0 0
    %1050 = vmatprep.subr.bf16.mxu0 0
    %1051 = vmatpush1.bf16.msra.mxu0 0
    %1052 = vmatprep.subr.bf16.mxu0 0
    %1053 = vmatpush1.bf16.msra.mxu0 0
    %1054 = vmatprep.subr.bf16.mxu0 0
    %1055 = vmatpush1.bf16.msra.mxu0 0
    %1056 = vmatprep.subr.bf16.mxu0 0
    %1057 = vmatpush1.bf16.msra.mxu0 0
    %1058 = vmatprep.subr.bf16.mxu0 0
    %1059 = vmatpush1.bf16.msra.mxu0 0
    %1060 = vmatprep.subr.bf16.mxu0 0
    %1061 = vmatpush1.bf16.msra.mxu0 0
    %1062 = vmatprep.subr.bf16.mxu0 0
    %1063 = vmatpush1.bf16.msra.mxu0 0
    %1064 = vmatprep.subr.bf16.mxu0 0
    %1065 = vmatpush1.bf16.msra.mxu0 0
    %1066 = vmatprep.subr.bf16.mxu0 0
    %1067 = vmatpush1.bf16.msra.mxu0 0
    %1068 = vmatprep.mubr.bf16.mxu0 0
    %1069 = vmatmul.mubr.bf16.gmra.mrb[0].mxu0 %v1034
    %v1070 = vpop.f32.mrb[0].mxu0
    %v1071 = vadd.f32 0.0, %v1070
    %v1072 = vpop.f32.mrb[0].mxu0
    %v1073 = vpop.f32.mrb[0].mxu0
    %v1074 = vadd.f32 0.0, %v1073
    %v1075 = vpop.f32.mrb[0].mxu0
    %1076 = vdwg.mxu0
    %v1077 = vpack.c.bf16 %v1074, %v1071
    %v1078 = vld [vmem:[%s10 + $0xc] sm:$0xf]
    %v1080 = vsel %vm435, %v1077, 0
    %v1083 = vsel %vm556, %v1078, 0
    %1085 = vmatprep.subr.bf16.mxu0 0
    %1086 = vmatpush1.bf16.msra.mxu0 %v1083
    %1087 = vmatprep.subr.bf16.mxu0 0
    %1088 = vmatpush1.bf16.msra.mxu0 0
    %1089 = vmatprep.subr.bf16.mxu0 0
    %1090 = vmatpush1.bf16.msra.mxu0 0
    %1091 = vmatprep.subr.bf16.mxu0 0
    %1092 = vmatpush1.bf16.msra.mxu0 0
    %1093 = vmatprep.subr.bf16.mxu0 0
    %1094 = vmatpush1.bf16.msra.mxu0 0
    %1095 = vmatprep.subr.bf16.mxu0 0
    %1096 = vmatpush1.bf16.msra.mxu0 0
    %1097 = vmatprep.subr.bf16.mxu0 0
    %1098 = vmatpush1.bf16.msra.mxu0 0
    %1099 = vmatprep.subr.bf16.mxu0 0
    %1100 = vmatpush1.bf16.msra.mxu0 0
    %1101 = vmatprep.subr.bf16.mxu0 0
    %1102 = vmatpush1.bf16.msra.mxu0 0
    %1103 = vmatprep.subr.bf16.mxu0 0
    %1104 = vmatpush1.bf16.msra.mxu0 0
    %1105 = vmatprep.subr.bf16.mxu0 0
    %1106 = vmatpush1.bf16.msra.mxu0 0
    %1107 = vmatprep.subr.bf16.mxu0 0
    %1108 = vmatpush1.bf16.msra.mxu0 0
    %1109 = vmatprep.subr.bf16.mxu0 0
    %1110 = vmatpush1.bf16.msra.mxu0 0
    %1111 = vmatprep.subr.bf16.mxu0 0
    %1112 = vmatpush1.bf16.msra.mxu0 0
    %1113 = vmatprep.subr.bf16.mxu0 0
    %1114 = vmatpush1.bf16.msra.mxu0 0
    %1115 = vmatprep.subr.bf16.mxu0 0
    %1116 = vmatpush1.bf16.msra.mxu0 0
    %1117 = vmatprep.mubr.bf16.mxu0 0
    %1118 = vmatmul.mubr.bf16.gmra.mrb[0].mxu0 %v1080
    %v1119 = vpop.f32.mrb[0].mxu0
    %v1120 = vadd.f32 0.0, %v1119
    %v1121 = vpop.f32.mrb[0].mxu0
    %v1122 = vpop.f32.mrb[0].mxu0
    %v1123 = vadd.f32 0.0, %v1122
    %v1124 = vpop.f32.mrb[0].mxu0
    %1125 = vdwg.mxu0
    %v1126 = vadd.f32 %v954, %v1120
    %v1127 = vadd.f32 %v955, %v1123
    %v1128 = vadd.f32 %v169, %v1126
    %v1129 = vadd.f32 %v170, %v1127
    %v1130 = vld [vmem:[#allocation14] sm:$0x1]
    %v1131 = vld [vmem:[#allocation16] sm:$0x1]
    %v1132 = vsel %vm175, %v1128, 0.0
    %1133 = vadd.xlane.f32.xlu0 %v1132
    %v1134 = vpop.xlane.xlu0 %1133
    %v1135 = vsel %vm175, %v1129, 0.0
    %1136 = vadd.xlane.f32.xlu0 %v1135
    %v1137 = vpop.xlane.xlu0 %1136
    %v1138 = vmul.f32 %v1134, %v182
    %v1139 = vmul.f32 %v1137, %v182
    %v1140 = vsub.f32 %v1128, %v1138
    %v1141 = vsub.f32 %v1129, %v1139
    %v1142 = vmul.f32 %v1140, %v1140
    %v1143 = vmul.f32 %v1141, %v1141
    %v1144 = vsel %vm175, %v1142, 0.0
    %1145 = vadd.xlane.f32.xlu0 %v1144
    %v1146 = vpop.xlane.xlu0 %1145
    %v1147 = vsel %vm175, %v1143, 0.0
    %1148 = vadd.xlane.f32.xlu0 %v1147
    %v1149 = vpop.xlane.xlu0 %1148
    %v1150 = vmul.f32 %v1146, 0.032258064
    %v1151 = vmul.f32 %v1149, 0.032258064
    %v1152 = vrsqrt.pop %v1150
    %v1153 = vmul.f32 %v1150, %v1152
    %vm1154 = vcmp.eq.f32.partialorder %v1150, inf
    %v1155 = vsel %vm1154, %v1150, %v1153
    %vm1156 = vcmp.eq.f32.partialorder %v1150, 0.0
    %v1157 = vand.u32 %v1150, 2147483648
    %v1158 = vsel %vm1156, %v1157, %v1155
    %v1159 = vrsqrt.pop %v1151
    %v1160 = vmul.f32 %v1151, %v1159
    %vm1161 = vcmp.eq.f32.partialorder %v1151, inf
    %v1162 = vsel %vm1161, %v1151, %v1160
    %vm1163 = vcmp.eq.f32.partialorder %v1151, 0.0
    %v1164 = vand.u32 %v1151, 2147483648
    %v1165 = vsel %vm1163, %v1164, %v1162
    %v1166 = vadd.f32 %v1158, 1e-06
    %v1167 = vadd.f32 %v1165, 1e-06
    %v1168 = vrcp.pop %v1166
    %v1169 = vrcp.pop %v1167
    %v1170 = vmul.f32 %v1140, %v1168
    %v1171 = vmul.f32 %v1141, %v1169
    %v1173 = vlaneseq
    %v1174 = vshrl.u32 %v1173, 7
    %v1175 = vsub.s32 0, %v1174
    %v1176 = vrot.slane %v1130, %v1175
    %v1178 = vmul.f32 %v1176, %v1170
    %v1179 = vmul.f32 %v1176, %v1171
    %v1181 = vlaneseq
    %v1182 = vshrl.u32 %v1181, 7
    %v1183 = vsub.s32 0, %v1182
    %v1184 = vrot.slane %v1131, %v1183
    %v1186 = vadd.f32 %v1178, %v1184
    %v1187 = vadd.f32 %v1179, %v1184
    %v1188 = vpack.c.bf16 %v1187, %v1186
    %v1189 = vld [vmem:[%s14] sm:$0xf]
    %v1190 = vld [vmem:[%s14 + $0x4] sm:$0xf]
    %v1191 = vld [vmem:[%s14 + $0x8] sm:$0xf]
    %v1192 = vld [vmem:[%s14 + $0xc] sm:$0xf]
    %v1193 = vld [vmem:[%s15] sm:$0x1]
    %v1195 = vlaneseq
    %v1196 = vshrl.u32 %v1195, 7
    %v1197 = vsub.s32 0, %v1196
    %v1198 = vrot.slane %v1193, %v1197
    %v1204 = vunpack.c.l.b16 %v1189
    %v1205 = vunpack.c.l.b16 %v1190
    %v1206 = vunpack.c.l.b16 %v1191
    %v1207 = vunpack.c.l.b16 %v1192
    %v1208 = vpack.c.b16 %v1205, %v1204
    %v1209 = vpack.c.b16 %v1207, %v1206
    %v1213 = vsel %vm175, %v1188, 0
    %1215 = vmatprep.subr.bf16.mxu0 0
    %1216 = vmatpush1.bf16.msra.mxu0 %v1208
    %1217 = vmatprep.subr.bf16.mxu0 0
    %1218 = vmatpush1.bf16.msra.mxu0 %v1209
    %1219 = vmatprep.subr.bf16.mxu0 0
    %1220 = vmatpush1.bf16.msra.mxu0 0
    %1221 = vmatprep.subr.bf16.mxu0 0
    %1222 = vmatpush1.bf16.msra.mxu0 0
    %1223 = vmatprep.subr.bf16.mxu0 0
    %1224 = vmatpush1.bf16.msra.mxu0 0
    %1225 = vmatprep.subr.bf16.mxu0 0
    %1226 = vmatpush1.bf16.msra.mxu0 0
    %1227 = vmatprep.subr.bf16.mxu0 0
    %1228 = vmatpush1.bf16.msra.mxu0 0
    %1229 = vmatprep.subr.bf16.mxu0 0
    %1230 = vmatpush1.bf16.msra.mxu0 0
    %1231 = vmatprep.subr.bf16.mxu0 0
    %1232 = vmatpush1.bf16.msra.mxu0 0
    %1233 = vmatprep.subr.bf16.mxu0 0
    %1234 = vmatpush1.bf16.msra.mxu0 0
    %1235 = vmatprep.subr.bf16.mxu0 0
    %1236 = vmatpush1.bf16.msra.mxu0 0
    %1237 = vmatprep.subr.bf16.mxu0 0
    %1238 = vmatpush1.bf16.msra.mxu0 0
    %1239 = vmatprep.subr.bf16.mxu0 0
    %1240 = vmatpush1.bf16.msra.mxu0 0
    %1241 = vmatprep.subr.bf16.mxu0 0
    %1242 = vmatpush1.bf16.msra.mxu0 0
    %1243 = vmatprep.subr.bf16.mxu0 0
    %1244 = vmatpush1.bf16.msra.mxu0 0
    %1245 = vmatprep.subr.bf16.mxu0 0
    %1246 = vmatpush1.bf16.msra.mxu0 0
    %1247 = vmatprep.mubr.bf16.mxu0 0
    %1248 = vmatmul.mubr.bf16.gmra.mrb[0].mxu0 %v1213
    %v1249 = vpop.f32.mrb[0].mxu0
    %v1250 = vadd.f32 %v1198, %v1249
    %v1251 = vpop.f32.mrb[0].mxu0
    %v1252 = vpop.f32.mrb[0].mxu0
    %v1253 = vadd.f32 %v1198, %v1252
    %v1254 = vpop.f32.mrb[0].mxu0
    %1255 = vdwg.mxu0
    %v1256 = vmul.f32 %v1250, 0.5
    %v1257 = vmul.f32 %v1253, 0.5
    %v1258 = vmul.f32 %v1250, 0.044715
    %v1259 = vmul.f32 %v1253, 0.044715
    %v1260 = vmul.f32 %v1258, %v1250
    %v1261 = vmul.f32 %v1259, %v1253
    %v1262 = vmul.f32 %v1260, %v1250
    %v1263 = vmul.f32 %v1261, %v1253
    %v1264 = vadd.f32 %v1250, %v1262
    %v1265 = vadd.f32 %v1253, %v1263
    %v1266 = vmul.f32 %v1264, 0.7978846
    %v1267 = vmul.f32 %v1265, 0.7978846
    %v1268 = vtanh.pop %v1266
    %v1269 = vtanh.pop %v1267
    %v1270 = vadd.f32 %v1268, 1.0
    %v1271 = vadd.f32 %v1269, 1.0
    %v1272 = vmul.f32 %v1256, %v1270
    %v1273 = vmul.f32 %v1257, %v1271
    %v1274 = vpack.c.bf16 %v1273, %v1272
    %v1275 = vld [vmem:[%s16] sm:$0xf]
    %v1276 = vld [vmem:[%s16 + $0x4] sm:$0xf]
    %v1277 = vld [vmem:[%s16 + $0x8] sm:$0xf]
    %v1278 = vld [vmem:[%s16 + $0xc] sm:$0xf]
    %v1279 = vld [vmem:[%s16 + $0x10] sm:$0xf]
    %v1280 = vld [vmem:[%s16 + $0x14] sm:$0xf]
    %v1281 = vld [vmem:[%s16 + $0x18] sm:$0xf]
    %v1282 = vld [vmem:[%s16 + $0x1c] sm:$0xf]
    %v1283 = vld [vmem:[%s17] sm:$0x1]
    %v1285 = vlaneseq
    %v1286 = vshrl.u32 %v1285, 7
    %v1287 = vsub.s32 0, %v1286
    %v1288 = vrot.slane %v1283, %v1287
    %v1298 = vunpack.c.l.b16 %v1275
    %v1299 = vunpack.c.l.b16 %v1276
    %v1300 = vunpack.c.l.b16 %v1277
    %v1301 = vunpack.c.l.b16 %v1278
    %v1302 = vunpack.c.l.b16 %v1279
    %v1303 = vunpack.c.l.b16 %v1280
    %v1304 = vunpack.c.l.b16 %v1281
    %v1305 = vunpack.c.l.b16 %v1282
    %v1306 = vpack.c.b16 %v1299, %v1298
    %v1307 = vpack.c.b16 %v1301, %v1300
    %v1308 = vpack.c.b16 %v1303, %v1302
    %v1309 = vpack.c.b16 %v1305, %v1304
    %vm1314 = vcmask 523264
    %v1316 = vsel %vm1314, %v1274, 0
    %1318 = vmatprep.subr.bf16.mxu0 0
    %1319 = vmatpush1.bf16.msra.mxu0 %v1306
    %1320 = vmatprep.subr.bf16.mxu0 0
    %1321 = vmatpush1.bf16.msra.mxu0 %v1307
    %1322 = vmatprep.subr.bf16.mxu0 0
    %1323 = vmatpush1.bf16.msra.mxu0 %v1308
    %1324 = vmatprep.subr.bf16.mxu0 0
    %1325 = vmatpush1.bf16.msra.mxu0 %v1309
    %1326 = vmatprep.subr.bf16.mxu0 0
    %1327 = vmatpush1.bf16.msra.mxu0 0
    %1328 = vmatprep.subr.bf16.mxu0 0
    %1329 = vmatpush1.bf16.msra.mxu0 0
    %1330 = vmatprep.subr.bf16.mxu0 0
    %1331 = vmatpush1.bf16.msra.mxu0 0
    %1332 = vmatprep.subr.bf16.mxu0 0
    %1333 = vmatpush1.bf16.msra.mxu0 0
    %1334 = vmatprep.subr.bf16.mxu0 0
    %1335 = vmatpush1.bf16.msra.mxu0 0
    %1336 = vmatprep.subr.bf16.mxu0 0
    %1337 = vmatpush1.bf16.msra.mxu0 0
    %1338 = vmatprep.subr.bf16.mxu0 0
    %1339 = vmatpush1.bf16.msra.mxu0 0
    %1340 = vmatprep.subr.bf16.mxu0 0
    %1341 = vmatpush1.bf16.msra.mxu0 0
    %1342 = vmatprep.subr.bf16.mxu0 0
    %1343 = vmatpush1.bf16.msra.mxu0 0
    %1344 = vmatprep.subr.bf16.mxu0 0
    %1345 = vmatpush1.bf16.msra.mxu0 0
    %1346 = vmatprep.subr.bf16.mxu0 0
    %1347 = vmatpush1.bf16.msra.mxu0 0
    %1348 = vmatprep.subr.bf16.mxu0 0
    %1349 = vmatpush1.bf16.msra.mxu0 0
    %1350 = vmatprep.mubr.bf16.mxu0 0
    %1351 = vmatmul.mubr.bf16.gmra.mrb[0].mxu0 %v1316
    %v1352 = vpop.f32.mrb[0].mxu0
    %v1353 = vadd.f32 %v1288, %v1352
    %v1354 = vpop.f32.mrb[0].mxu0
    %v1355 = vpop.f32.mrb[0].mxu0
    %v1356 = vadd.f32 %v1288, %v1355
    %v1357 = vpop.f32.mrb[0].mxu0
    %1358 = vdwg.mxu0
    %v1359 = vadd.f32 %v1128, %v1353
    %v1360 = vadd.f32 %v1129, %v1356
    %1361 = vst.msk [vmem:[#allocation17] sm:$0xff] %vm175, %v1359
    %1362 = vst.msk [vmem:[#allocation17 + $0x8] sm:$0xff] %vm175, %v1360
    // Predicated region
    $region110: #{tpu_custom_call.1} parent=1 // pred_check
      _
    $region111: #{tpu_custom_call.1} parent=1 // pred_check_branch
      %1364 = sbr.rel (0) target = $region113
    $region112: #{tpu_custom_call.1} parent=1 // pred_region
      %s1366 = ssub.s32 256, 256
      %1367 = vsyncadd [#allocation4], %s1366
      %s1368 = sshll.u32 [#allocation17], 4
      %s1369 = int_to_ptr.vmem [resolvable:$true] %s1368
      %1374 = dma.vmem_to_hbm [thread:$0]  %s1369, 256, %s18, [#allocation4], 128, 128, 8
    $region113: #{tpu_custom_call.1} parent=1 // pred_fallthru
      _
    // Predicated region
    $region114: #{tpu_custom_call.1} parent=1 // pred_check
      _
    $region115: #{tpu_custom_call.1} parent=1 // pred_check_branch
      %1376 = sbr.rel (0) target = $region117
    $region116: #{tpu_custom_call.1} parent=1 // pred_region
      %1377 = dma.done [#allocation4], 256
    $region117: #{tpu_custom_call.1} parent=1 // pred_fallthru
      _
    %1378 = vsyncpa [#allocation3], 1
    %1379 = vsyncpa [#allocation6], 1
    %1380 = vsyncpa [#allocation9], 1
    %1381 = vsyncpa [#allocation12], 1
    %1382 = vsyncpa [#allocation15], 1
    %1383 = vsyncpa [#allocation4], 1

</llo_original>
